<compile_context>
chip_gen: v7x
topology: tpu7x:2x2x1
jax: 0.10.0
libtpu: 0.0.40
codegen_flags: <defaults>
</compile_context>

<pallas_src>
import functools

import jax
import jax.numpy as jnp
from jax import lax
from jax.experimental import pallas as pl
from jax.experimental.pallas import tpu as pltpu

_LN_EPS = 1e-5


def _encoder_kernel(x_ref, ln1w_ref, ln1b_ref, wqkv_ref, bqkv_ref, wo_ref, bo_ref,
                    ln2w_ref, ln2b_ref, w1_ref, b1_ref, w2_ref, b2_ref, out_ref,
                    *, num_heads, compute_dtype):
    layer = pl.program_id(1)

    # Layer 0: seed the resident output tile with the (summary ++ tokens) input.
    @pl.when(layer == 0)
    def _():
        out_ref[...] = x_ref[...]

    h = out_ref[0].astype(jnp.float32)              # (S, E) running residual stream
    S, E = h.shape
    H = num_heads
    Dh = E // H
    cdt = compute_dtype

    def layer_norm(v, w2d, b2d):
        mu = jnp.mean(v, axis=-1, keepdims=True)
        var = jnp.mean((v - mu) ** 2, axis=-1, keepdims=True)
        return (v - mu) * lax.rsqrt(var + _LN_EPS) * w2d + b2d

    def mm(a, b):
        return jnp.dot(a.astype(cdt), b.astype(cdt),
                       preferred_element_type=jnp.float32)

    # ---- self-attention block (pre-norm) ----
    hn = layer_norm(h, ln1w_ref[0], ln1b_ref[0])                     # (S, E)
    qkv = mm(hn, wqkv_ref[0]) + bqkv_ref[0]                          # (S, 3E)
    wo = wo_ref[0]                                                   # (E, E)
    scale = 1.0 / (Dh ** 0.5)

    attn_out = jnp.zeros((S, E), jnp.float32)
    for hh in range(H):                                              # H is small & static
        qh = qkv[:, hh * Dh:(hh + 1) * Dh] * scale                   # (S, Dh)
        kh = qkv[:, E + hh * Dh:E + (hh + 1) * Dh]                   # (S, Dh)
        vh = qkv[:, 2 * E + hh * Dh:2 * E + (hh + 1) * Dh]           # (S, Dh)
        # scores: contract the head dim of both operands (no explicit transpose needed)
        s = lax.dot_general(qh.astype(cdt), kh.astype(cdt),
                            (((1,), (1,)), ((), ())),
                            preferred_element_type=jnp.float32)      # (S, S)
        m = jnp.max(s, axis=-1, keepdims=True)
        e = jnp.exp(s - m)
        p = e / jnp.sum(e, axis=-1, keepdims=True)
        oh = mm(p, vh)                                               # (S, Dh)
        # fold head hh into the output projection:
        #   concat_h(oh) @ Wo == sum_h oh @ Wo[rows of head hh]
        attn_out = attn_out + mm(oh, wo[hh * Dh:(hh + 1) * Dh, :])
    h = h + attn_out + bo_ref[0]

    # ---- feed-forward block (pre-norm) ----
    hn2 = layer_norm(h, ln2w_ref[0], ln2b_ref[0])
    ff = jnp.maximum(mm(hn2, w1_ref[0]) + b1_ref[0], 0.0)            # relu
    h = h + mm(ff, w2_ref[0]) + b2_ref[0]

    out_ref[0] = h.astype(out_ref.dtype)


def eegpt_style_encoder(x_tokens, summary_tokens, params, *, num_heads,
                        compute_dtype=jnp.float32):
    """
    x_tokens       : (B, S, E) float32
    summary_tokens : (1, n_sum, E) float32 or None
    params (stacked over layers L, pre-transposed for row-major matmuls):
        ln1_w, ln1_b, ln2_w, ln2_b : (L, E)
        w_qkv : (L, E, 3E)   b_qkv : (L, 3E)     (in_proj.weight.T / in_proj.bias)
        w_o   : (L, E, E)    b_o   : (L, E)      (out_proj.weight.T / out_proj.bias)
        w1    : (L, E, F)    b1    : (L, F)      (linear1.weight.T / bias)
        w2    : (L, F, E)    b2    : (L, E)      (linear2.weight.T / bias)
    returns (B, n_sum + S, E) float32
    """
    B, _, E = x_tokens.shape
    if summary_tokens is not None and summary_tokens.shape[1] > 0:
        n_sum = summary_tokens.shape[1]
        x_in = jnp.concatenate(
            [jnp.broadcast_to(summary_tokens.astype(x_tokens.dtype), (B, n_sum, E)),
             x_tokens], axis=1)
    else:
        x_in = x_tokens
    St = x_in.shape[1]
    L = params["w_qkv"].shape[0]
    F = params["w1"].shape[2]

    def as3d(a):  # (L, X) -> (L, 1, X): block (1, 1, X) == full last-two extents
        return a.reshape(a.shape[0], 1, a.shape[1])

    ln1_w, ln1_b = as3d(params["ln1_w"]), as3d(params["ln1_b"])
    ln2_w, ln2_b = as3d(params["ln2_w"]), as3d(params["ln2_b"])
    b_qkv, b_o = as3d(params["b_qkv"]), as3d(params["b_o"])
    b1, b2 = as3d(params["b1"]), as3d(params["b2"])

    kernel = functools.partial(_encoder_kernel, num_heads=num_heads,
                               compute_dtype=compute_dtype)

    def mat(r, c):
        return pl.BlockSpec((1, r, c), lambda b, l: (l, 0, 0))

    def vec(c):
        return pl.BlockSpec((1, 1, c), lambda b, l: (l, 0, 0))

    # Scoped-VMEM budget: per-layer parameter blocks are double-buffered by the pipeline;
    # x / out tiles are single-resident.  Leave generous headroom, cap at 64 MiB (v7x-safe).
    per_layer_param_elems = (E * 3 * E + 3 * E + E * E + E + E * F + F + F * E + E + 4 * E)
    vmem_bytes = 4 * (2 * per_layer_param_elems + 2 * St * E) * 4  # f32, 2x buffers, 2x slack
    vmem_limit = int(min(64 * 1024 * 1024, max(32 * 1024 * 1024, vmem_bytes)))

    # Advisory cost estimate for XLA's scheduler (this op is tiny; keep it well placed).
    flops_layer = (2 * St * E * 3 * E + 2 * St * St * E + 2 * St * St * E
                   + 2 * St * E * E + 2 * St * E * F + 2 * St * F * E)
    param_arrays = (ln1_w, ln1_b, params["w_qkv"], b_qkv, params["w_o"], b_o,
                    ln2_w, ln2_b, params["w1"], b1, params["w2"], b2)
    cost = pl.CostEstimate(
        flops=int(B * L * flops_layer),
        transcendentals=int(B * L * (St * St + 2 * St)),
        bytes_accessed=int(4 * (2 * x_in.size + B * sum(int(a.size) for a in param_arrays))),
    )

    out = pl.pallas_call(
        kernel,
        out_shape=jax.ShapeDtypeStruct((B, St, E), x_tokens.dtype),
        grid_spec=pltpu.PrefetchScalarGridSpec(
            num_scalar_prefetch=0,
            grid=(B, L),
            in_specs=[
                pl.BlockSpec((1, St, E), lambda b, l: (b, 0, 0)),   # x_in (summary ++ tokens)
                vec(E), vec(E),                                     # ln1 w, b
                mat(E, 3 * E), vec(3 * E),                          # qkv projection
                mat(E, E), vec(E),                                  # out projection
                vec(E), vec(E),                                     # ln2 w, b
                mat(E, F), vec(F),                                  # ffn up
                mat(F, E), vec(E),                                  # ffn down
            ],
            out_specs=pl.BlockSpec((1, St, E), lambda b, l: (b, 0, 0)),
        ),
        compiler_params=pltpu.CompilerParams(
            dimension_semantics=("parallel", "arbitrary"),
            vmem_limit_bytes=vmem_limit,
        ),
        cost_estimate=cost,
    )(x_in, ln1_w, ln1_b, params["w_qkv"], b_qkv, params["w_o"], b_o,
      ln2_w, ln2_b, params["w1"], b1, params["w2"], b2)
    return out


if __name__ == "__main__":
    # Small shapes consistent with EEGPT_Style_Encoder's forward pass.
    B = 2
    seq_len = 8
    embed_dim = 32
    num_heads = 4
    ff_dim = 64
    num_layers = 2
    num_summary_tokens = 1

    E, F, L = embed_dim, ff_dim, num_layers
    key = jax.random.PRNGKey(0)
    ks = jax.random.split(key, 10)
    scale = 0.05

    params = {
        "ln1_w": jnp.ones((L, E), jnp.float32),
        "ln1_b": jnp.zeros((L, E), jnp.float32),
        "ln2_w": jnp.ones((L, E), jnp.float32),
        "ln2_b": jnp.zeros((L, E), jnp.float32),
        "w_qkv": scale * jax.random.normal(ks[0], (L, E, 3 * E), jnp.float32),
        "b_qkv": scale * jax.random.normal(ks[1], (L, 3 * E), jnp.float32),
        "w_o":   scale * jax.random.normal(ks[2], (L, E, E), jnp.float32),
        "b_o":   scale * jax.random.normal(ks[3], (L, E), jnp.float32),
        "w1":    scale * jax.random.normal(ks[4], (L, E, F), jnp.float32),
        "b1":    scale * jax.random.normal(ks[5], (L, F), jnp.float32),
        "w2":    scale * jax.random.normal(ks[6], (L, F, E), jnp.float32),
        "b2":    scale * jax.random.normal(ks[7], (L, E), jnp.float32),
    }
    summary_tokens = jax.random.normal(ks[8], (1, num_summary_tokens, E), jnp.float32)
    x_tokens = jax.random.normal(ks[9], (B, seq_len, E), jnp.float32)

    out = eegpt_style_encoder(x_tokens, summary_tokens, params, num_heads=num_heads)
    out = jax.block_until_ready(out)

    # Pure-JAX reference (same math as PyTorch pre-norm TransformerEncoder, eval mode).
    def reference(x_tok, summary, p):
        Bq = x_tok.shape[0]
        x = jnp.concatenate(
            [jnp.broadcast_to(summary, (Bq,) + summary.shape[1:]), x_tok], axis=1)

        def ln(v, w, b):
            mu = v.mean(-1, keepdims=True)
            var = ((v - mu) ** 2).mean(-1, keepdims=True)
            return (v - mu) / jnp.sqrt(var + _LN_EPS) * w + b

        hp = lax.Precision.HIGHEST
        Dh = E // num_heads
        for li in range(L):
            hn = ln(x, p["ln1_w"][li], p["ln1_b"][li])
            qkv = jnp.einsum("bse,ef->bsf", hn, p["w_qkv"][li], precision=hp) + p["b_qkv"][li]
            q, k, v = jnp.split(qkv, 3, axis=-1)
            Bh, S, _ = q.shape
            q = q.reshape(Bh, S, num_heads, Dh).transpose(0, 2, 1, 3) / jnp.sqrt(Dh)
            k = k.reshape(Bh, S, num_heads, Dh).transpose(0, 2, 1, 3)
            v = v.reshape(Bh, S, num_heads, Dh).transpose(0, 2, 1, 3)
            sc = jnp.einsum("bhqd,bhkd->bhqk", q, k, precision=hp)
            a = jax.nn.softmax(sc, axis=-1)
            o = jnp.einsum("bhqk,bhkd->bhqd", a, v, precision=hp)
            o = o.transpose(0, 2, 1, 3).reshape(Bh, S, E)
            x = x + jnp.einsum("bse,ef->bsf", o, p["w_o"][li], precision=hp) + p["b_o"][li]
            hn2 = ln(x, p["ln2_w"][li], p["ln2_b"][li])
            ff = jax.nn.relu(
                jnp.einsum("bse,ef->bsf", hn2, p["w1"][li], precision=hp) + p["b1"][li])
            x = x + jnp.einsum("bsf,fe->bse", ff, p["w2"][li], precision=hp) + p["b2"][li]
        return x

    ref = reference(x_tokens, summary_tokens, params)
    assert out.shape == ref.shape == (B, num_summary_tokens + seq_len, E)
    max_diff = float(jnp.max(jnp.abs(out - ref)))
    assert max_diff < 2e-2, f"mismatch vs reference: max |diff| = {max_diff}"
    print("KERNEL_OK")
</pallas_src>

<mosaic_0001>
module attributes {stable_mosaic.version = 11 : i64} {
  func.func @_encoder_kernel(%arg0: i32, %arg1: i32, %arg2: memref<1x9x32xf32, #tpu.memory_space<vmem>>, %arg3: memref<1x1x32xf32, #tpu.memory_space<vmem>>, %arg4: memref<1x1x32xf32, #tpu.memory_space<vmem>>, %arg5: memref<1x32x96xf32, #tpu.memory_space<vmem>>, %arg6: memref<1x1x96xf32, #tpu.memory_space<vmem>>, %arg7: memref<1x32x32xf32, #tpu.memory_space<vmem>>, %arg8: memref<1x1x32xf32, #tpu.memory_space<vmem>>, %arg9: memref<1x1x32xf32, #tpu.memory_space<vmem>>, %arg10: memref<1x1x32xf32, #tpu.memory_space<vmem>>, %arg11: memref<1x32x64xf32, #tpu.memory_space<vmem>>, %arg12: memref<1x1x64xf32, #tpu.memory_space<vmem>>, %arg13: memref<1x64x32xf32, #tpu.memory_space<vmem>>, %arg14: memref<1x1x32xf32, #tpu.memory_space<vmem>>, %arg15: memref<1x9x32xf32, #tpu.memory_space<vmem>>) attributes {dimension_semantics = [#tpu.dimension_semantics<parallel>, #tpu.dimension_semantics<arbitrary>], iteration_bounds = array<i64: 2, 2>, scalar_prefetch = 0 : i64, scratch_operands = 0 : i64, tpu.core_type = #tpu.core_type<tc>, window_params = [{transform_indices = @transform_0, window_bounds = array<i64: 1, 9, 32>}, {transform_indices = @transform_1, window_bounds = array<i64: 1, 1, 32>}, {transform_indices = @transform_2, window_bounds = array<i64: 1, 1, 32>}, {transform_indices = @transform_3, window_bounds = array<i64: 1, 32, 96>}, {transform_indices = @transform_4, window_bounds = array<i64: 1, 1, 96>}, {transform_indices = @transform_5, window_bounds = array<i64: 1, 32, 32>}, {transform_indices = @transform_6, window_bounds = array<i64: 1, 1, 32>}, {transform_indices = @transform_7, window_bounds = array<i64: 1, 1, 32>}, {transform_indices = @transform_8, window_bounds = array<i64: 1, 1, 32>}, {transform_indices = @transform_9, window_bounds = array<i64: 1, 32, 64>}, {transform_indices = @transform_10, window_bounds = array<i64: 1, 1, 64>}, {transform_indices = @transform_11, window_bounds = array<i64: 1, 64, 32>}, {transform_indices = @transform_12, window_bounds = array<i64: 1, 1, 32>}, {transform_indices = @transform_13, window_bounds = array<i64: 1, 9, 32>}]} {
    %c0_i32 = arith.constant 0 : i32
    %0 = arith.cmpi eq, %arg1, %c0_i32 : i32
    %1 = arith.extui %0 : i1 to i32
    %c0_i32_0 = arith.constant 0 : i32
    %2 = arith.cmpi ne, %1, %c0_i32_0 : i32
    scf.if %2 {
      %c0_80 = arith.constant 0 : index
      %c0_81 = arith.constant 0 : index
      %c0_82 = arith.constant 0 : index
      %168 = vector.load %arg2[%c0_80, %c0_81, %c0_82] : memref<1x9x32xf32, #tpu.memory_space<vmem>>, vector<1x9x32xf32>
      %c0_83 = arith.constant 0 : index
      %c0_84 = arith.constant 0 : index
      %c0_85 = arith.constant 0 : index
      %169 = vector.load %arg15[%c0_83, %c0_84, %c0_85] : memref<1x9x32xf32, #tpu.memory_space<vmem>>, vector<1x9x32xf32>
      tpu.vector_store %arg15[%c0_83, %c0_84, %c0_85], %168 {strides = array<i32>} : memref<1x9x32xf32, #tpu.memory_space<vmem>>, vector<1x9x32xf32>,
    } else {
    }
    %c0 = arith.constant 0 : index
    %c0_1 = arith.constant 0 : index
    %c0_2 = arith.constant 0 : index
    %3 = vector.load %arg15[%c0, %c0_1, %c0_2] : memref<1x9x32xf32, #tpu.memory_space<vmem>>, vector<1x9x32xf32>
    %4 = vector.shape_cast %3 : vector<1x9x32xf32> to vector<9x32xf32>
    %c0_3 = arith.constant 0 : index
    %c0_4 = arith.constant 0 : index
    %c0_5 = arith.constant 0 : index
    %5 = vector.load %arg3[%c0_3, %c0_4, %c0_5] : memref<1x1x32xf32, #tpu.memory_space<vmem>>, vector<1x1x32xf32>
    %6 = vector.shape_cast %5 : vector<1x1x32xf32> to vector<1x32xf32>
    %c0_6 = arith.constant 0 : index
    %c0_7 = arith.constant 0 : index
    %c0_8 = arith.constant 0 : index
    %7 = vector.load %arg4[%c0_6, %c0_7, %c0_8] : memref<1x1x32xf32, #tpu.memory_space<vmem>>, vector<1x1x32xf32>
    %8 = vector.shape_cast %7 : vector<1x1x32xf32> to vector<1x32xf32>
    %cst = arith.constant dense<0.000000e+00> : vector<9xf32>
    %9 = vector.multi_reduction <add>, %4, %cst [1] : vector<9x32xf32> to vector<9xf32>
    %10 = vector.shape_cast %9 : vector<9xf32> to vector<9x1xf32>
    %cst_9 = arith.constant 3.200000e+01 : f32
    %11 = vector.broadcast %cst_9 : f32 to vector<9x1xf32>
    %12 = arith.divf %10, %11 : vector<9x1xf32>
    %13 = vector.broadcast %12 : vector<9x1xf32> to vector<9x32xf32>
    %14 = arith.subf %4, %13 : vector<9x32xf32>
    %15 = arith.mulf %14, %14 : vector<9x32xf32>
    %cst_10 = arith.constant dense<0.000000e+00> : vector<9xf32>
    %16 = vector.multi_reduction <add>, %15, %cst_10 [1] : vector<9x32xf32> to vector<9xf32>
    %17 = vector.shape_cast %16 : vector<9xf32> to vector<9x1xf32>
    %cst_11 = arith.constant 3.200000e+01 : f32
    %18 = vector.broadcast %cst_11 : f32 to vector<9x1xf32>
    %19 = arith.divf %17, %18 : vector<9x1xf32>
    %20 = vector.broadcast %12 : vector<9x1xf32> to vector<9x32xf32>
    %21 = arith.subf %4, %20 : vector<9x32xf32>
    %cst_12 = arith.constant 9.99999974E-6 : f32
    %22 = vector.broadcast %cst_12 : f32 to vector<9x1xf32>
    %23 = arith.addf %19, %22 : vector<9x1xf32>
    %24 = math.rsqrt %23 : vector<9x1xf32>
    %25 = vector.broadcast %24 : vector<9x1xf32> to vector<9x32xf32>
    %26 = arith.mulf %21, %25 : vector<9x32xf32>
    %27 = vector.broadcast %6 : vector<1x32xf32> to vector<9x32xf32>
    %28 = arith.mulf %26, %27 : vector<9x32xf32>
    %29 = vector.broadcast %8 : vector<1x32xf32> to vector<9x32xf32>
    %30 = arith.addf %28, %29 : vector<9x32xf32>
    %c0_13 = arith.constant 0 : index
    %c0_14 = arith.constant 0 : index
    %c0_15 = arith.constant 0 : index
    %31 = vector.load %arg5[%c0_13, %c0_14, %c0_15] : memref<1x32x96xf32, #tpu.memory_space<vmem>>, vector<1x32x96xf32>
    %32 = vector.shape_cast %31 : vector<1x32x96xf32> to vector<32x96xf32>
    %cst_16 = arith.constant dense<0.000000e+00> : vector<9x96xf32>
    %33 = tpu.matmul %30, %32, %cst_16 {dimension_numbers = #tpu.dot_dimension_numbers<[1], [0], [0], [1], [0, 0, 1, 1], [], []>} : vector<9x32xf32>, vector<32x96xf32>, vector<9x96xf32> -> vector<9x96xf32>
    %c0_17 = arith.constant 0 : index
    %c0_18 = arith.constant 0 : index
    %c0_19 = arith.constant 0 : index
    %34 = vector.load %arg6[%c0_17, %c0_18, %c0_19] : memref<1x1x96xf32, #tpu.memory_space<vmem>>, vector<1x1x96xf32>
    %35 = vector.shape_cast %34 : vector<1x1x96xf32> to vector<1x96xf32>
    %36 = vector.broadcast %35 : vector<1x96xf32> to vector<9x96xf32>
    %37 = arith.addf %33, %36 : vector<9x96xf32>
    %c0_20 = arith.constant 0 : index
    %c0_21 = arith.constant 0 : index
    %c0_22 = arith.constant 0 : index
    %38 = vector.load %arg7[%c0_20, %c0_21, %c0_22] : memref<1x32x32xf32, #tpu.memory_space<vmem>>, vector<1x32x32xf32>
    %39 = vector.shape_cast %38 : vector<1x32x32xf32> to vector<32x32xf32>
    %cst_23 = arith.constant 0.000000e+00 : f32
    %40 = vector.broadcast %cst_23 : f32 to vector<9x32xf32>
    %41 = vector.extract_strided_slice %37 {offsets = [0, 0], sizes = [9, 8], strides = [1, 1]} : vector<9x96xf32> to vector<9x8xf32>
    %cst_24 = arith.constant 0.353553385 : f32
    %42 = vector.broadcast %cst_24 : f32 to vector<9x8xf32>
    %43 = arith.mulf %41, %42 : vector<9x8xf32>
    %44 = vector.extract_strided_slice %37 {offsets = [0, 32], sizes = [9, 8], strides = [1, 1]} : vector<9x96xf32> to vector<9x8xf32>
    %45 = vector.extract_strided_slice %37 {offsets = [0, 64], sizes = [9, 8], strides = [1, 1]} : vector<9x96xf32> to vector<9x8xf32>
    %cst_25 = arith.constant dense<0.000000e+00> : vector<9x9xf32>
    %46 = tpu.matmul %43, %44, %cst_25 {dimension_numbers = #tpu.dot_dimension_numbers<[1], [1], [0], [0], [0, 0, 1, 0], [], []>} : vector<9x8xf32>, vector<9x8xf32>, vector<9x9xf32> -> vector<9x9xf32>
    %cst_26 = arith.constant dense<0xFF800000> : vector<9xf32>
    %47 = vector.multi_reduction <maximumf>, %46, %cst_26 [1] : vector<9x9xf32> to vector<9xf32>
    %48 = vector.shape_cast %47 : vector<9xf32> to vector<9x1xf32>
    %49 = vector.broadcast %48 : vector<9x1xf32> to vector<9x9xf32>
    %50 = arith.subf %46, %49 : vector<9x9xf32>
    %51 = math.exp %50 : vector<9x9xf32>
    %cst_27 = arith.constant dense<0.000000e+00> : vector<9xf32>
    %52 = vector.multi_reduction <add>, %51, %cst_27 [1] : vector<9x9xf32> to vector<9xf32>
    %53 = vector.shape_cast %52 : vector<9xf32> to vector<9x1xf32>
    %54 = vector.broadcast %53 : vector<9x1xf32> to vector<9x9xf32>
    %55 = arith.divf %51, %54 : vector<9x9xf32>
    %cst_28 = arith.constant dense<0.000000e+00> : vector<9x8xf32>
    %56 = tpu.matmul %55, %45, %cst_28 {dimension_numbers = #tpu.dot_dimension_numbers<[1], [0], [0], [1], [0, 0, 1, 1], [], []>} : vector<9x9xf32>, vector<9x8xf32>, vector<9x8xf32> -> vector<9x8xf32>
    %57 = vector.extract_strided_slice %39 {offsets = [0, 0], sizes = [8, 32], strides = [1, 1]} : vector<32x32xf32> to vector<8x32xf32>
    %cst_29 = arith.constant dense<0.000000e+00> : vector<9x32xf32>
    %58 = tpu.matmul %56, %57, %cst_29 {dimension_numbers = #tpu.dot_dimension_numbers<[1], [0], [0], [1], [0, 0, 1, 1], [], []>} : vector<9x8xf32>, vector<8x32xf32>, vector<9x32xf32> -> vector<9x32xf32>
    %59 = arith.addf %40, %58 : vector<9x32xf32>
    %60 = vector.extract_strided_slice %37 {offsets = [0, 8], sizes = [9, 8], strides = [1, 1]} : vector<9x96xf32> to vector<9x8xf32>
    %cst_30 = arith.constant 0.353553385 : f32
    %61 = vector.broadcast %cst_30 : f32 to vector<9x8xf32>
    %62 = arith.mulf %60, %61 : vector<9x8xf32>
    %63 = vector.extract_strided_slice %37 {offsets = [0, 40], sizes = [9, 8], strides = [1, 1]} : vector<9x96xf32> to vector<9x8xf32>
    %64 = vector.extract_strided_slice %37 {offsets = [0, 72], sizes = [9, 8], strides = [1, 1]} : vector<9x96xf32> to vector<9x8xf32>
    %cst_31 = arith.constant dense<0.000000e+00> : vector<9x9xf32>
    %65 = tpu.matmul %62, %63, %cst_31 {dimension_numbers = #tpu.dot_dimension_numbers<[1], [1], [0], [0], [0, 0, 1, 0], [], []>} : vector<9x8xf32>, vector<9x8xf32>, vector<9x9xf32> -> vector<9x9xf32>
    %cst_32 = arith.constant dense<0xFF800000> : vector<9xf32>
    %66 = vector.multi_reduction <maximumf>, %65, %cst_32 [1] : vector<9x9xf32> to vector<9xf32>
    %67 = vector.shape_cast %66 : vector<9xf32> to vector<9x1xf32>
    %68 = vector.broadcast %67 : vector<9x1xf32> to vector<9x9xf32>
    %69 = arith.subf %65, %68 : vector<9x9xf32>
    %70 = math.exp %69 : vector<9x9xf32>
    %cst_33 = arith.constant dense<0.000000e+00> : vector<9xf32>
    %71 = vector.multi_reduction <add>, %70, %cst_33 [1] : vector<9x9xf32> to vector<9xf32>
    %72 = vector.shape_cast %71 : vector<9xf32> to vector<9x1xf32>
    %73 = vector.broadcast %72 : vector<9x1xf32> to vector<9x9xf32>
    %74 = arith.divf %70, %73 : vector<9x9xf32>
    %cst_34 = arith.constant dense<0.000000e+00> : vector<9x8xf32>
    %75 = tpu.matmul %74, %64, %cst_34 {dimension_numbers = #tpu.dot_dimension_numbers<[1], [0], [0], [1], [0, 0, 1, 1], [], []>} : vector<9x9xf32>, vector<9x8xf32>, vector<9x8xf32> -> vector<9x8xf32>
    %76 = vector.extract_strided_slice %39 {offsets = [8, 0], sizes = [8, 32], strides = [1, 1]} : vector<32x32xf32> to vector<8x32xf32>
    %cst_35 = arith.constant dense<0.000000e+00> : vector<9x32xf32>
    %77 = tpu.matmul %75, %76, %cst_35 {dimension_numbers = #tpu.dot_dimension_numbers<[1], [0], [0], [1], [0, 0, 1, 1], [], []>} : vector<9x8xf32>, vector<8x32xf32>, vector<9x32xf32> -> vector<9x32xf32>
    %78 = arith.addf %59, %77 : vector<9x32xf32>
    %79 = vector.extract_strided_slice %37 {offsets = [0, 16], sizes = [9, 8], strides = [1, 1]} : vector<9x96xf32> to vector<9x8xf32>
    %cst_36 = arith.constant 0.353553385 : f32
    %80 = vector.broadcast %cst_36 : f32 to vector<9x8xf32>
    %81 = arith.mulf %79, %80 : vector<9x8xf32>
    %82 = vector.extract_strided_slice %37 {offsets = [0, 48], sizes = [9, 8], strides = [1, 1]} : vector<9x96xf32> to vector<9x8xf32>
    %83 = vector.extract_strided_slice %37 {offsets = [0, 80], sizes = [9, 8], strides = [1, 1]} : vector<9x96xf32> to vector<9x8xf32>
    %cst_37 = arith.constant dense<0.000000e+00> : vector<9x9xf32>
    %84 = tpu.matmul %81, %82, %cst_37 {dimension_numbers = #tpu.dot_dimension_numbers<[1], [1], [0], [0], [0, 0, 1, 0], [], []>} : vector<9x8xf32>, vector<9x8xf32>, vector<9x9xf32> -> vector<9x9xf32>
    %cst_38 = arith.constant dense<0xFF800000> : vector<9xf32>
    %85 = vector.multi_reduction <maximumf>, %84, %cst_38 [1] : vector<9x9xf32> to vector<9xf32>
    %86 = vector.shape_cast %85 : vector<9xf32> to vector<9x1xf32>
    %87 = vector.broadcast %86 : vector<9x1xf32> to vector<9x9xf32>
    %88 = arith.subf %84, %87 : vector<9x9xf32>
    %89 = math.exp %88 : vector<9x9xf32>
    %cst_39 = arith.constant dense<0.000000e+00> : vector<9xf32>
    %90 = vector.multi_reduction <add>, %89, %cst_39 [1] : vector<9x9xf32> to vector<9xf32>
    %91 = vector.shape_cast %90 : vector<9xf32> to vector<9x1xf32>
    %92 = vector.broadcast %91 : vector<9x1xf32> to vector<9x9xf32>
    %93 = arith.divf %89, %92 : vector<9x9xf32>
    %cst_40 = arith.constant dense<0.000000e+00> : vector<9x8xf32>
    %94 = tpu.matmul %93, %83, %cst_40 {dimension_numbers = #tpu.dot_dimension_numbers<[1], [0], [0], [1], [0, 0, 1, 1], [], []>} : vector<9x9xf32>, vector<9x8xf32>, vector<9x8xf32> -> vector<9x8xf32>
    %95 = vector.extract_strided_slice %39 {offsets = [16, 0], sizes = [8, 32], strides = [1, 1]} : vector<32x32xf32> to vector<8x32xf32>
    %cst_41 = arith.constant dense<0.000000e+00> : vector<9x32xf32>
    %96 = tpu.matmul %94, %95, %cst_41 {dimension_numbers = #tpu.dot_dimension_numbers<[1], [0], [0], [1], [0, 0, 1, 1], [], []>} : vector<9x8xf32>, vector<8x32xf32>, vector<9x32xf32> -> vector<9x32xf32>
    %97 = arith.addf %78, %96 : vector<9x32xf32>
    %98 = vector.extract_strided_slice %37 {offsets = [0, 24], sizes = [9, 8], strides = [1, 1]} : vector<9x96xf32> to vector<9x8xf32>
    %cst_42 = arith.constant 0.353553385 : f32
    %99 = vector.broadcast %cst_42 : f32 to vector<9x8xf32>
    %100 = arith.mulf %98, %99 : vector<9x8xf32>
    %101 = vector.extract_strided_slice %37 {offsets = [0, 56], sizes = [9, 8], strides = [1, 1]} : vector<9x96xf32> to vector<9x8xf32>
    %102 = vector.extract_strided_slice %37 {offsets = [0, 88], sizes = [9, 8], strides = [1, 1]} : vector<9x96xf32> to vector<9x8xf32>
    %cst_43 = arith.constant dense<0.000000e+00> : vector<9x9xf32>
    %103 = tpu.matmul %100, %101, %cst_43 {dimension_numbers = #tpu.dot_dimension_numbers<[1], [1], [0], [0], [0, 0, 1, 0], [], []>} : vector<9x8xf32>, vector<9x8xf32>, vector<9x9xf32> -> vector<9x9xf32>
    %cst_44 = arith.constant dense<0xFF800000> : vector<9xf32>
    %104 = vector.multi_reduction <maximumf>, %103, %cst_44 [1] : vector<9x9xf32> to vector<9xf32>
    %105 = vector.shape_cast %104 : vector<9xf32> to vector<9x1xf32>
    %106 = vector.broadcast %105 : vector<9x1xf32> to vector<9x9xf32>
    %107 = arith.subf %103, %106 : vector<9x9xf32>
    %108 = math.exp %107 : vector<9x9xf32>
    %cst_45 = arith.constant dense<0.000000e+00> : vector<9xf32>
    %109 = vector.multi_reduction <add>, %108, %cst_45 [1] : vector<9x9xf32> to vector<9xf32>
    %110 = vector.shape_cast %109 : vector<9xf32> to vector<9x1xf32>
    %111 = vector.broadcast %110 : vector<9x1xf32> to vector<9x9xf32>
    %112 = arith.divf %108, %111 : vector<9x9xf32>
    %cst_46 = arith.constant dense<0.000000e+00> : vector<9x8xf32>
    %113 = tpu.matmul %112, %102, %cst_46 {dimension_numbers = #tpu.dot_dimension_numbers<[1], [0], [0], [1], [0, 0, 1, 1], [], []>} : vector<9x9xf32>, vector<9x8xf32>, vector<9x8xf32> -> vector<9x8xf32>
    %114 = vector.extract_strided_slice %39 {offsets = [24, 0], sizes = [8, 32], strides = [1, 1]} : vector<32x32xf32> to vector<8x32xf32>
    %cst_47 = arith.constant dense<0.000000e+00> : vector<9x32xf32>
    %115 = tpu.matmul %113, %114, %cst_47 {dimension_numbers = #tpu.dot_dimension_numbers<[1], [0], [0], [1], [0, 0, 1, 1], [], []>} : vector<9x8xf32>, vector<8x32xf32>, vector<9x32xf32> -> vector<9x32xf32>
    %116 = arith.addf %97, %115 : vector<9x32xf32>
    %117 = arith.addf %4, %116 : vector<9x32xf32>
    %c0_48 = arith.constant 0 : index
    %c0_49 = arith.constant 0 : index
    %c0_50 = arith.constant 0 : index
    %118 = vector.load %arg8[%c0_48, %c0_49, %c0_50] : memref<1x1x32xf32, #tpu.memory_space<vmem>>, vector<1x1x32xf32>
    %119 = vector.shape_cast %118 : vector<1x1x32xf32> to vector<1x32xf32>
    %120 = vector.broadcast %119 : vector<1x32xf32> to vector<9x32xf32>
    %121 = arith.addf %117, %120 : vector<9x32xf32>
    %c0_51 = arith.constant 0 : index
    %c0_52 = arith.constant 0 : index
    %c0_53 = arith.constant 0 : index
    %122 = vector.load %arg9[%c0_51, %c0_52, %c0_53] : memref<1x1x32xf32, #tpu.memory_space<vmem>>, vector<1x1x32xf32>
    %123 = vector.shape_cast %122 : vector<1x1x32xf32> to vector<1x32xf32>
    %c0_54 = arith.constant 0 : index
    %c0_55 = arith.constant 0 : index
    %c0_56 = arith.constant 0 : index
    %124 = vector.load %arg10[%c0_54, %c0_55, %c0_56] : memref<1x1x32xf32, #tpu.memory_space<vmem>>, vector<1x1x32xf32>
    %125 = vector.shape_cast %124 : vector<1x1x32xf32> to vector<1x32xf32>
    %cst_57 = arith.constant dense<0.000000e+00> : vector<9xf32>
    %126 = vector.multi_reduction <add>, %121, %cst_57 [1] : vector<9x32xf32> to vector<9xf32>
    %127 = vector.shape_cast %126 : vector<9xf32> to vector<9x1xf32>
    %cst_58 = arith.constant 3.200000e+01 : f32
    %128 = vector.broadcast %cst_58 : f32 to vector<9x1xf32>
    %129 = arith.divf %127, %128 : vector<9x1xf32>
    %130 = vector.broadcast %129 : vector<9x1xf32> to vector<9x32xf32>
    %131 = arith.subf %121, %130 : vector<9x32xf32>
    %132 = arith.mulf %131, %131 : vector<9x32xf32>
    %cst_59 = arith.constant dense<0.000000e+00> : vector<9xf32>
    %133 = vector.multi_reduction <add>, %132, %cst_59 [1] : vector<9x32xf32> to vector<9xf32>
    %134 = vector.shape_cast %133 : vector<9xf32> to vector<9x1xf32>
    %cst_60 = arith.constant 3.200000e+01 : f32
    %135 = vector.broadcast %cst_60 : f32 to vector<9x1xf32>
    %136 = arith.divf %134, %135 : vector<9x1xf32>
    %137 = vector.broadcast %129 : vector<9x1xf32> to vector<9x32xf32>
    %138 = arith.subf %121, %137 : vector<9x32xf32>
    %cst_61 = arith.constant 9.99999974E-6 : f32
    %139 = vector.broadcast %cst_61 : f32 to vector<9x1xf32>
    %140 = arith.addf %136, %139 : vector<9x1xf32>
    %141 = math.rsqrt %140 : vector<9x1xf32>
    %142 = vector.broadcast %141 : vector<9x1xf32> to vector<9x32xf32>
    %143 = arith.mulf %138, %142 : vector<9x32xf32>
    %144 = vector.broadcast %123 : vector<1x32xf32> to vector<9x32xf32>
    %145 = arith.mulf %143, %144 : vector<9x32xf32>
    %146 = vector.broadcast %125 : vector<1x32xf32> to vector<9x32xf32>
    %147 = arith.addf %145, %146 : vector<9x32xf32>
    %c0_62 = arith.constant 0 : index
    %c0_63 = arith.constant 0 : index
    %c0_64 = arith.constant 0 : index
    %148 = vector.load %arg11[%c0_62, %c0_63, %c0_64] : memref<1x32x64xf32, #tpu.memory_space<vmem>>, vector<1x32x64xf32>
    %149 = vector.shape_cast %148 : vector<1x32x64xf32> to vector<32x64xf32>
    %cst_65 = arith.constant dense<0.000000e+00> : vector<9x64xf32>
    %150 = tpu.matmul %147, %149, %cst_65 {dimension_numbers = #tpu.dot_dimension_numbers<[1], [0], [0], [1], [0, 0, 1, 1], [], []>} : vector<9x32xf32>, vector<32x64xf32>, vector<9x64xf32> -> vector<9x64xf32>
    %c0_66 = arith.constant 0 : index
    %c0_67 = arith.constant 0 : index
    %c0_68 = arith.constant 0 : index
    %151 = vector.load %arg12[%c0_66, %c0_67, %c0_68] : memref<1x1x64xf32, #tpu.memory_space<vmem>>, vector<1x1x64xf32>
    %152 = vector.shape_cast %151 : vector<1x1x64xf32> to vector<1x64xf32>
    %153 = vector.broadcast %152 : vector<1x64xf32> to vector<9x64xf32>
    %154 = arith.addf %150, %153 : vector<9x64xf32>
    %cst_69 = arith.constant 0.000000e+00 : f32
    %155 = vector.broadcast %cst_69 : f32 to vector<9x64xf32>
    %156 = arith.maximumf %154, %155 : vector<9x64xf32>
    %c0_70 = arith.constant 0 : index
    %c0_71 = arith.constant 0 : index
    %c0_72 = arith.constant 0 : index
    %157 = vector.load %arg13[%c0_70, %c0_71, %c0_72] : memref<1x64x32xf32, #tpu.memory_space<vmem>>, vector<1x64x32xf32>
    %158 = vector.shape_cast %157 : vector<1x64x32xf32> to vector<64x32xf32>
    %cst_73 = arith.constant dense<0.000000e+00> : vector<9x32xf32>
    %159 = tpu.matmul %156, %158, %cst_73 {dimension_numbers = #tpu.dot_dimension_numbers<[1], [0], [0], [1], [0, 0, 1, 1], [], []>} : vector<9x64xf32>, vector<64x32xf32>, vector<9x32xf32> -> vector<9x32xf32>
    %160 = arith.addf %121, %159 : vector<9x32xf32>
    %c0_74 = arith.constant 0 : index
    %c0_75 = arith.constant 0 : index
    %c0_76 = arith.constant 0 : index
    %161 = vector.load %arg14[%c0_74, %c0_75, %c0_76] : memref<1x1x32xf32, #tpu.memory_space<vmem>>, vector<1x1x32xf32>
    %162 = vector.shape_cast %161 : vector<1x1x32xf32> to vector<1x32xf32>
    %163 = vector.broadcast %162 : vector<1x32xf32> to vector<9x32xf32>
    %164 = arith.addf %160, %163 : vector<9x32xf32>
    %c0_77 = arith.constant 0 : index
    %c0_78 = arith.constant 0 : index
    %c0_79 = arith.constant 0 : index
    %165 = vector.load %arg15[%c0_77, %c0_78, %c0_79] : memref<1x9x32xf32, #tpu.memory_space<vmem>>, vector<1x9x32xf32>
    %166 = vector.shape_cast %165 : vector<1x9x32xf32> to vector<9x32xf32>
    %167 = vector.shape_cast %164 : vector<9x32xf32> to vector<1x9x32xf32>
    tpu.vector_store %arg15[%c0_77, %c0_78, %c0_79], %167 {strides = array<i32>} : memref<1x9x32xf32, #tpu.memory_space<vmem>>, vector<1x9x32xf32>,
    return
  }
  func.func @transform_0(%arg0: i32, %arg1: i32) -> (i32, i32, i32) {
    %c0_i32 = arith.constant 0 : i32
    %c0_i32_0 = arith.constant 0 : i32
    %c0_i32_1 = arith.constant 0 : i32
    return %arg0, %c0_i32, %c0_i32_0 : i32, i32, i32
  }
  func.func @transform_1(%arg0: i32, %arg1: i32) -> (i32, i32, i32) {
    %c0_i32 = arith.constant 0 : i32
    %c0_i32_0 = arith.constant 0 : i32
    %c0_i32_1 = arith.constant 0 : i32
    return %arg1, %c0_i32, %c0_i32_0 : i32, i32, i32
  }
  func.func @transform_2(%arg0: i32, %arg1: i32) -> (i32, i32, i32) {
    %c0_i32 = arith.constant 0 : i32
    %c0_i32_0 = arith.constant 0 : i32
    %c0_i32_1 = arith.constant 0 : i32
    return %arg1, %c0_i32, %c0_i32_0 : i32, i32, i32
  }
  func.func @transform_3(%arg0: i32, %arg1: i32) -> (i32, i32, i32) {
    %c0_i32 = arith.constant 0 : i32
    %c0_i32_0 = arith.constant 0 : i32
    %c0_i32_1 = arith.constant 0 : i32
    return %arg1, %c0_i32, %c0_i32_0 : i32, i32, i32
  }
  func.func @transform_4(%arg0: i32, %arg1: i32) -> (i32, i32, i32) {
    %c0_i32 = arith.constant 0 : i32
    %c0_i32_0 = arith.constant 0 : i32
    %c0_i32_1 = arith.constant 0 : i32
    return %arg1, %c0_i32, %c0_i32_0 : i32, i32, i32
  }
  func.func @transform_5(%arg0: i32, %arg1: i32) -> (i32, i32, i32) {
    %c0_i32 = arith.constant 0 : i32
    %c0_i32_0 = arith.constant 0 : i32
    %c0_i32_1 = arith.constant 0 : i32
    return %arg1, %c0_i32, %c0_i32_0 : i32, i32, i32
  }
  func.func @transform_6(%arg0: i32, %arg1: i32) -> (i32, i32, i32) {
    %c0_i32 = arith.constant 0 : i32
    %c0_i32_0 = arith.constant 0 : i32
    %c0_i32_1 = arith.constant 0 : i32
    return %arg1, %c0_i32, %c0_i32_0 : i32, i32, i32
  }
  func.func @transform_7(%arg0: i32, %arg1: i32) -> (i32, i32, i32) {
    %c0_i32 = arith.constant 0 : i32
    %c0_i32_0 = arith.constant 0 : i32
    %c0_i32_1 = arith.constant 0 : i32
    return %arg1, %c0_i32, %c0_i32_0 : i32, i32, i32
  }
  func.func @transform_8(%arg0: i32, %arg1: i32) -> (i32, i32, i32) {
    %c0_i32 = arith.constant 0 : i32
    %c0_i32_0 = arith.constant 0 : i32
    %c0_i32_1 = arith.constant 0 : i32
    return %arg1, %c0_i32, %c0_i32_0 : i32, i32, i32
  }
  func.func @transform_9(%arg0: i32, %arg1: i32) -> (i32, i32, i32) {
    %c0_i32 = arith.constant 0 : i32
    %c0_i32_0 = arith.constant 0 : i32
    %c0_i32_1 = arith.constant 0 : i32
    return %arg1, %c0_i32, %c0_i32_0 : i32, i32, i32
  }
  func.func @transform_10(%arg0: i32, %arg1: i32) -> (i32, i32, i32) {
    %c0_i32 = arith.constant 0 : i32
    %c0_i32_0 = arith.constant 0 : i32
    %c0_i32_1 = arith.constant 0 : i32
    return %arg1, %c0_i32, %c0_i32_0 : i32, i32, i32
  }
  func.func @transform_11(%arg0: i32, %arg1: i32) -> (i32, i32, i32) {
    %c0_i32 = arith.constant 0 : i32
    %c0_i32_0 = arith.constant 0 : i32
    %c0_i32_1 = arith.constant 0 : i32
    return %arg1, %c0_i32, %c0_i32_0 : i32, i32, i32
  }
  func.func @transform_12(%arg0: i32, %arg1: i32) -> (i32, i32, i32) {
    %c0_i32 = arith.constant 0 : i32
    %c0_i32_0 = arith.constant 0 : i32
    %c0_i32_1 = arith.constant 0 : i32
    return %arg1, %c0_i32, %c0_i32_0 : i32, i32, i32
  }
  func.func @transform_13(%arg0: i32, %arg1: i32) -> (i32, i32, i32) {
    %c0_i32 = arith.constant 0 : i32
    %c0_i32_0 = arith.constant 0 : i32
    %c0_i32_1 = arith.constant 0 : i32
    return %arg0, %c0_i32, %c0_i32_0 : i32, i32, i32
  }
}

</mosaic_0001>

<llo_original>
// kernel: tpu_custom_call.1
$region0: #{tpu_custom_call.1}
  #allocation0 [shape = 'u32[]', space=smem, size = 0x4, offset = 0x4, fixed_abs, tag = 'smem constant byte address 0x4 - core index']
  #allocation1 [shape = 'u32[144,128]{1,0:T(1,128)}', space=vmem, size = 0x12000, scoped, tag = 'internal scratch']
  %s0 = inlined_call_operand.vmem [shape: f32[2,9,32], index: 0, kind: input, shape index: {}]
  %s1 = inlined_call_operand.vmem [shape: f32[2,1,32], index: 1, kind: input, shape index: {}]
  %s2 = inlined_call_operand.vmem [shape: f32[2,1,32], index: 2, kind: input, shape index: {}]
  %s3 = inlined_call_operand.vmem [shape: f32[2,32,96], index: 3, kind: input, shape index: {}]
  %s4 = inlined_call_operand.vmem [shape: f32[2,1,96], index: 4, kind: input, shape index: {}]
  %s5 = inlined_call_operand.vmem [shape: f32[2,32,32], index: 5, kind: input, shape index: {}]
  %s6 = inlined_call_operand.vmem [shape: f32[2,1,32], index: 6, kind: input, shape index: {}]
  %s7 = inlined_call_operand.vmem [shape: f32[2,1,32], index: 7, kind: input, shape index: {}]
  %s8 = inlined_call_operand.vmem [shape: f32[2,1,32], index: 8, kind: input, shape index: {}]
  %s9 = inlined_call_operand.vmem [shape: f32[2,32,64], index: 9, kind: input, shape index: {}]
  %s10 = inlined_call_operand.vmem [shape: f32[2,1,64], index: 10, kind: input, shape index: {}]
  %s11 = inlined_call_operand.vmem [shape: f32[2,64,32], index: 11, kind: input, shape index: {}]
  %s12 = inlined_call_operand.vmem [shape: f32[2,1,32], index: 12, kind: input, shape index: {}]
  %s13 = inlined_call_operand.vmem [shape: f32[2,9,32], index: 13, kind: output, shape index: {}]
  %s14 = sld [smem:[#allocation0]]
  $region89: #{tpu_custom_call.1} parent=0
    _
  %s16 = ssub.s32 1, %s14
  %s17 = scalar_select 0, %s16, %s14
  loop: start=0, step=1, limit=6
  $region2: #{tpu_custom_call.1} parent=0 // loop_pre_header
    _
  $region3: #{tpu_custom_call.1} parent=0 // loop_header
    %s19 = sphi 0, %s23
    %p20 = scmp.ge.s32.totalorder %s19, 6
    %s26 = sphi 0, %s38
    %s27 = sphi 0, %s34
    %s28 = sphi 0, %s26
    %s29 = sphi 0, %s27
    %s30 = sphi 0, %s28
    %s31 = sphi 0, %s29
    %s41 = sphi 0, %s43
    %s44 = sphi 0, %s41
    %s45 = sphi 0, %s44
    %s61 = sphi 0, %s45
    %s67 = sphi 0, %s69
    %s70 = sphi 0, %s67
    %s71 = sphi 0, %s70
    %s87 = sphi 0, %s71
    %s93 = sphi 0, %s95
    %s96 = sphi 0, %s93
    %s97 = sphi 0, %s96
    %s113 = sphi 0, %s97
    %s119 = sphi 0, %s121
    %s122 = sphi 0, %s119
    %s123 = sphi 0, %s122
    %s139 = sphi 0, %s123
    %s145 = sphi 0, %s147
    %s148 = sphi 0, %s145
    %s149 = sphi 0, %s148
    %s165 = sphi 0, %s149
    %s171 = sphi 0, %s173
    %s174 = sphi 0, %s171
    %s175 = sphi 0, %s174
    %s191 = sphi 0, %s175
    %s197 = sphi 0, %s199
    %s200 = sphi 0, %s197
    %s201 = sphi 0, %s200
    %s217 = sphi 0, %s201
    %s223 = sphi 0, %s225
    %s226 = sphi 0, %s223
    %s227 = sphi 0, %s226
    %s243 = sphi 0, %s227
    %s249 = sphi 0, %s251
    %s252 = sphi 0, %s249
    %s253 = sphi 0, %s252
    %s269 = sphi 0, %s253
    %s275 = sphi 0, %s277
    %s278 = sphi 0, %s275
    %s279 = sphi 0, %s278
    %s295 = sphi 0, %s279
    %s301 = sphi 0, %s303
    %s304 = sphi 0, %s301
    %s305 = sphi 0, %s304
    %s321 = sphi 0, %s305
    %s327 = sphi 0, %s329
    %s330 = sphi 0, %s327
    %s331 = sphi 0, %s330
    %s347 = sphi 0, %s331
    %s353 = sphi 0, %s355
    %s356 = sphi 0, %s353
    %s357 = sphi 0, %s356
    %s373 = sphi 0, %s357
    %s379 = sphi 0, %s381
    %s382 = sphi 0, %s379
    %s383 = sphi 0, %s382
    %s399 = sphi 0, %s383
  $region4: #{tpu_custom_call.1} parent=0 // loop_header_branch
    %22 = sbr.rel (%p20) target = $region8
  $region5: #{tpu_custom_call.1} parent=0 // loop_body
    %s24 = ssub.s32 %s19, 1
    %s25 = ssub.s32 %s19, 2
    %s32 = sadd.s32 1, %s27
    %p33 = scmp.ge.s32.totalorder %s32, 2
    %s34 = scalar_select %p33, 0, %s32
    %s35 = sadd.s32 1, %s26
    %s36 = scalar_select %p33, %s35, %s26
    %p37 = scmp.ge.s32.totalorder %s36, 2
    %s38 = scalar_select %p37, 0, %s36
    %s39 = ssub.s32 %s26, %s38
    %p40 = scmp.eq.s32.totalorder %s39, 0
    %s42 = sadd.s32 %s41, 1
    %s43 = scalar_select %p40, %s41, %s42
    %p46 = pneg %p40
    %p47 = scmp.eq.s32.totalorder %s19, 3
    %p48 = por %p46, %p47
    %p49 = scmp.ne.s32.totalorder %s41, %s44
    %p50 = scmp.eq.s32.totalorder %s19, 0
    %p51 = por %p49, %p50
    %p52 = scmp.ne.s32.totalorder %s41, %s44
    %p53 = scmp.eq.s32.totalorder %s24, 3
    %p54 = por %p52, %p53
    %p55 = scmp.ne.s32.totalorder %s44, %s45
    %p56 = scmp.eq.s32.totalorder %s24, 0
    %p57 = por %p55, %p56
    %p58 = scmp.ne.s32.totalorder %s44, %s45
    %p59 = scmp.eq.s32.totalorder %s25, 3
    %p60 = por %p58, %p59
    %p62 = scmp.ne.s32.totalorder %s45, %s61
    %p63 = scmp.eq.s32.totalorder %s25, 0
    %p64 = por %p62, %p63
    %s65 = ssub.s32 %s27, %s34
    %p66 = scmp.eq.s32.totalorder %s65, 0
    %s68 = sadd.s32 %s67, 1
    %s69 = scalar_select %p66, %s67, %s68
    %p72 = pneg %p66
    %p73 = scmp.eq.s32.totalorder %s19, 3
    %p74 = por %p72, %p73
    %p75 = scmp.ne.s32.totalorder %s67, %s70
    %p76 = scmp.eq.s32.totalorder %s19, 0
    %p77 = por %p75, %p76
    %p78 = scmp.ne.s32.totalorder %s67, %s70
    %p79 = scmp.eq.s32.totalorder %s24, 3
    %p80 = por %p78, %p79
    %p81 = scmp.ne.s32.totalorder %s70, %s71
    %p82 = scmp.eq.s32.totalorder %s24, 0
    %p83 = por %p81, %p82
    %p84 = scmp.ne.s32.totalorder %s70, %s71
    %p85 = scmp.eq.s32.totalorder %s25, 3
    %p86 = por %p84, %p85
    %p88 = scmp.ne.s32.totalorder %s71, %s87
    %p89 = scmp.eq.s32.totalorder %s25, 0
    %p90 = por %p88, %p89
    %s91 = ssub.s32 %s27, %s34
    %p92 = scmp.eq.s32.totalorder %s91, 0
    %s94 = sadd.s32 %s93, 1
    %s95 = scalar_select %p92, %s93, %s94
    %p98 = pneg %p92
    %p99 = scmp.eq.s32.totalorder %s19, 3
    %p100 = por %p98, %p99
    %p101 = scmp.ne.s32.totalorder %s93, %s96
    %p102 = scmp.eq.s32.totalorder %s19, 0
    %p103 = por %p101, %p102
    %p104 = scmp.ne.s32.totalorder %s93, %s96
    %p105 = scmp.eq.s32.totalorder %s24, 3
    %p106 = por %p104, %p105
    %p107 = scmp.ne.s32.totalorder %s96, %s97
    %p108 = scmp.eq.s32.totalorder %s24, 0
    %p109 = por %p107, %p108
    %p110 = scmp.ne.s32.totalorder %s96, %s97
    %p111 = scmp.eq.s32.totalorder %s25, 3
    %p112 = por %p110, %p111
    %p114 = scmp.ne.s32.totalorder %s97, %s113
    %p115 = scmp.eq.s32.totalorder %s25, 0
    %p116 = por %p114, %p115
    %s117 = ssub.s32 %s27, %s34
    %p118 = scmp.eq.s32.totalorder %s117, 0
    %s120 = sadd.s32 %s119, 1
    %s121 = scalar_select %p118, %s119, %s120
    %p124 = pneg %p118
    %p125 = scmp.eq.s32.totalorder %s19, 3
    %p126 = por %p124, %p125
    %p127 = scmp.ne.s32.totalorder %s119, %s122
    %p128 = scmp.eq.s32.totalorder %s19, 0
    %p129 = por %p127, %p128
    %p130 = scmp.ne.s32.totalorder %s119, %s122
    %p131 = scmp.eq.s32.totalorder %s24, 3
    %p132 = por %p130, %p131
    %p133 = scmp.ne.s32.totalorder %s122, %s123
    %p134 = scmp.eq.s32.totalorder %s24, 0
    %p135 = por %p133, %p134
    %p136 = scmp.ne.s32.totalorder %s122, %s123
    %p137 = scmp.eq.s32.totalorder %s25, 3
    %p138 = por %p136, %p137
    %p140 = scmp.ne.s32.totalorder %s123, %s139
    %p141 = scmp.eq.s32.totalorder %s25, 0
    %p142 = por %p140, %p141
    %s143 = ssub.s32 %s27, %s34
    %p144 = scmp.eq.s32.totalorder %s143, 0
    %s146 = sadd.s32 %s145, 1
    %s147 = scalar_select %p144, %s145, %s146
    %p150 = pneg %p144
    %p151 = scmp.eq.s32.totalorder %s19, 3
    %p152 = por %p150, %p151
    %p153 = scmp.ne.s32.totalorder %s145, %s148
    %p154 = scmp.eq.s32.totalorder %s19, 0
    %p155 = por %p153, %p154
    %p156 = scmp.ne.s32.totalorder %s145, %s148
    %p157 = scmp.eq.s32.totalorder %s24, 3
    %p158 = por %p156, %p157
    %p159 = scmp.ne.s32.totalorder %s148, %s149
    %p160 = scmp.eq.s32.totalorder %s24, 0
    %p161 = por %p159, %p160
    %p162 = scmp.ne.s32.totalorder %s148, %s149
    %p163 = scmp.eq.s32.totalorder %s25, 3
    %p164 = por %p162, %p163
    %p166 = scmp.ne.s32.totalorder %s149, %s165
    %p167 = scmp.eq.s32.totalorder %s25, 0
    %p168 = por %p166, %p167
    %s169 = ssub.s32 %s27, %s34
    %p170 = scmp.eq.s32.totalorder %s169, 0
    %s172 = sadd.s32 %s171, 1
    %s173 = scalar_select %p170, %s171, %s172
    %p176 = pneg %p170
    %p177 = scmp.eq.s32.totalorder %s19, 3
    %p178 = por %p176, %p177
    %p179 = scmp.ne.s32.totalorder %s171, %s174
    %p180 = scmp.eq.s32.totalorder %s19, 0
    %p181 = por %p179, %p180
    %p182 = scmp.ne.s32.totalorder %s171, %s174
    %p183 = scmp.eq.s32.totalorder %s24, 3
    %p184 = por %p182, %p183
    %p185 = scmp.ne.s32.totalorder %s174, %s175
    %p186 = scmp.eq.s32.totalorder %s24, 0
    %p187 = por %p185, %p186
    %p188 = scmp.ne.s32.totalorder %s174, %s175
    %p189 = scmp.eq.s32.totalorder %s25, 3
    %p190 = por %p188, %p189
    %p192 = scmp.ne.s32.totalorder %s175, %s191
    %p193 = scmp.eq.s32.totalorder %s25, 0
    %p194 = por %p192, %p193
    %s195 = ssub.s32 %s27, %s34
    %p196 = scmp.eq.s32.totalorder %s195, 0
    %s198 = sadd.s32 %s197, 1
    %s199 = scalar_select %p196, %s197, %s198
    %p202 = pneg %p196
    %p203 = scmp.eq.s32.totalorder %s19, 3
    %p204 = por %p202, %p203
    %p205 = scmp.ne.s32.totalorder %s197, %s200
    %p206 = scmp.eq.s32.totalorder %s19, 0
    %p207 = por %p205, %p206
    %p208 = scmp.ne.s32.totalorder %s197, %s200
    %p209 = scmp.eq.s32.totalorder %s24, 3
    %p210 = por %p208, %p209
    %p211 = scmp.ne.s32.totalorder %s200, %s201
    %p212 = scmp.eq.s32.totalorder %s24, 0
    %p213 = por %p211, %p212
    %p214 = scmp.ne.s32.totalorder %s200, %s201
    %p215 = scmp.eq.s32.totalorder %s25, 3
    %p216 = por %p214, %p215
    %p218 = scmp.ne.s32.totalorder %s201, %s217
    %p219 = scmp.eq.s32.totalorder %s25, 0
    %p220 = por %p218, %p219
    %s221 = ssub.s32 %s27, %s34
    %p222 = scmp.eq.s32.totalorder %s221, 0
    %s224 = sadd.s32 %s223, 1
    %s225 = scalar_select %p222, %s223, %s224
    %p228 = pneg %p222
    %p229 = scmp.eq.s32.totalorder %s19, 3
    %p230 = por %p228, %p229
    %p231 = scmp.ne.s32.totalorder %s223, %s226
    %p232 = scmp.eq.s32.totalorder %s19, 0
    %p233 = por %p231, %p232
    %p234 = scmp.ne.s32.totalorder %s223, %s226
    %p235 = scmp.eq.s32.totalorder %s24, 3
    %p236 = por %p234, %p235
    %p237 = scmp.ne.s32.totalorder %s226, %s227
    %p238 = scmp.eq.s32.totalorder %s24, 0
    %p239 = por %p237, %p238
    %p240 = scmp.ne.s32.totalorder %s226, %s227
    %p241 = scmp.eq.s32.totalorder %s25, 3
    %p242 = por %p240, %p241
    %p244 = scmp.ne.s32.totalorder %s227, %s243
    %p245 = scmp.eq.s32.totalorder %s25, 0
    %p246 = por %p244, %p245
    %s247 = ssub.s32 %s27, %s34
    %p248 = scmp.eq.s32.totalorder %s247, 0
    %s250 = sadd.s32 %s249, 1
    %s251 = scalar_select %p248, %s249, %s250
    %p254 = pneg %p248
    %p255 = scmp.eq.s32.totalorder %s19, 3
    %p256 = por %p254, %p255
    %p257 = scmp.ne.s32.totalorder %s249, %s252
    %p258 = scmp.eq.s32.totalorder %s19, 0
    %p259 = por %p257, %p258
    %p260 = scmp.ne.s32.totalorder %s249, %s252
    %p261 = scmp.eq.s32.totalorder %s24, 3
    %p262 = por %p260, %p261
    %p263 = scmp.ne.s32.totalorder %s252, %s253
    %p264 = scmp.eq.s32.totalorder %s24, 0
    %p265 = por %p263, %p264
    %p266 = scmp.ne.s32.totalorder %s252, %s253
    %p267 = scmp.eq.s32.totalorder %s25, 3
    %p268 = por %p266, %p267
    %p270 = scmp.ne.s32.totalorder %s253, %s269
    %p271 = scmp.eq.s32.totalorder %s25, 0
    %p272 = por %p270, %p271
    %s273 = ssub.s32 %s27, %s34
    %p274 = scmp.eq.s32.totalorder %s273, 0
    %s276 = sadd.s32 %s275, 1
    %s277 = scalar_select %p274, %s275, %s276
    %p280 = pneg %p274
    %p281 = scmp.eq.s32.totalorder %s19, 3
    %p282 = por %p280, %p281
    %p283 = scmp.ne.s32.totalorder %s275, %s278
    %p284 = scmp.eq.s32.totalorder %s19, 0
    %p285 = por %p283, %p284
    %p286 = scmp.ne.s32.totalorder %s275, %s278
    %p287 = scmp.eq.s32.totalorder %s24, 3
    %p288 = por %p286, %p287
    %p289 = scmp.ne.s32.totalorder %s278, %s279
    %p290 = scmp.eq.s32.totalorder %s24, 0
    %p291 = por %p289, %p290
    %p292 = scmp.ne.s32.totalorder %s278, %s279
    %p293 = scmp.eq.s32.totalorder %s25, 3
    %p294 = por %p292, %p293
    %p296 = scmp.ne.s32.totalorder %s279, %s295
    %p297 = scmp.eq.s32.totalorder %s25, 0
    %p298 = por %p296, %p297
    %s299 = ssub.s32 %s27, %s34
    %p300 = scmp.eq.s32.totalorder %s299, 0
    %s302 = sadd.s32 %s301, 1
    %s303 = scalar_select %p300, %s301, %s302
    %p306 = pneg %p300
    %p307 = scmp.eq.s32.totalorder %s19, 3
    %p308 = por %p306, %p307
    %p309 = scmp.ne.s32.totalorder %s301, %s304
    %p310 = scmp.eq.s32.totalorder %s19, 0
    %p311 = por %p309, %p310
    %p312 = scmp.ne.s32.totalorder %s301, %s304
    %p313 = scmp.eq.s32.totalorder %s24, 3
    %p314 = por %p312, %p313
    %p315 = scmp.ne.s32.totalorder %s304, %s305
    %p316 = scmp.eq.s32.totalorder %s24, 0
    %p317 = por %p315, %p316
    %p318 = scmp.ne.s32.totalorder %s304, %s305
    %p319 = scmp.eq.s32.totalorder %s25, 3
    %p320 = por %p318, %p319
    %p322 = scmp.ne.s32.totalorder %s305, %s321
    %p323 = scmp.eq.s32.totalorder %s25, 0
    %p324 = por %p322, %p323
    %s325 = ssub.s32 %s27, %s34
    %p326 = scmp.eq.s32.totalorder %s325, 0
    %s328 = sadd.s32 %s327, 1
    %s329 = scalar_select %p326, %s327, %s328
    %p332 = pneg %p326
    %p333 = scmp.eq.s32.totalorder %s19, 3
    %p334 = por %p332, %p333
    %p335 = scmp.ne.s32.totalorder %s327, %s330
    %p336 = scmp.eq.s32.totalorder %s19, 0
    %p337 = por %p335, %p336
    %p338 = scmp.ne.s32.totalorder %s327, %s330
    %p339 = scmp.eq.s32.totalorder %s24, 3
    %p340 = por %p338, %p339
    %p341 = scmp.ne.s32.totalorder %s330, %s331
    %p342 = scmp.eq.s32.totalorder %s24, 0
    %p343 = por %p341, %p342
    %p344 = scmp.ne.s32.totalorder %s330, %s331
    %p345 = scmp.eq.s32.totalorder %s25, 3
    %p346 = por %p344, %p345
    %p348 = scmp.ne.s32.totalorder %s331, %s347
    %p349 = scmp.eq.s32.totalorder %s25, 0
    %p350 = por %p348, %p349
    %s351 = ssub.s32 %s27, %s34
    %p352 = scmp.eq.s32.totalorder %s351, 0
    %s354 = sadd.s32 %s353, 1
    %s355 = scalar_select %p352, %s353, %s354
    %p358 = pneg %p352
    %p359 = scmp.eq.s32.totalorder %s19, 3
    %p360 = por %p358, %p359
    %p361 = scmp.ne.s32.totalorder %s353, %s356
    %p362 = scmp.eq.s32.totalorder %s19, 0
    %p363 = por %p361, %p362
    %p364 = scmp.ne.s32.totalorder %s353, %s356
    %p365 = scmp.eq.s32.totalorder %s24, 3
    %p366 = por %p364, %p365
    %p367 = scmp.ne.s32.totalorder %s356, %s357
    %p368 = scmp.eq.s32.totalorder %s24, 0
    %p369 = por %p367, %p368
    %p370 = scmp.ne.s32.totalorder %s356, %s357
    %p371 = scmp.eq.s32.totalorder %s25, 3
    %p372 = por %p370, %p371
    %p374 = scmp.ne.s32.totalorder %s357, %s373
    %p375 = scmp.eq.s32.totalorder %s25, 0
    %p376 = por %p374, %p375
    %s377 = ssub.s32 %s26, %s38
    %p378 = scmp.eq.s32.totalorder %s377, 0
    %s380 = sadd.s32 %s379, 1
    %s381 = scalar_select %p378, %s379, %s380
    %p384 = pneg %p378
    %p385 = scmp.eq.s32.totalorder %s19, 3
    %p386 = por %p384, %p385
    %p387 = scmp.ne.s32.totalorder %s379, %s382
    %p388 = scmp.eq.s32.totalorder %s19, 0
    %p389 = por %p387, %p388
    %p390 = scmp.ne.s32.totalorder %s379, %s382
    %p391 = scmp.eq.s32.totalorder %s24, 3
    %p392 = por %p390, %p391
    %p393 = scmp.ne.s32.totalorder %s382, %s383
    %p394 = scmp.eq.s32.totalorder %s24, 0
    %p395 = por %p393, %p394
    %p396 = scmp.ne.s32.totalorder %s382, %s383
    %p397 = scmp.eq.s32.totalorder %s25, 3
    %p398 = por %p396, %p397
    %p400 = scmp.ne.s32.totalorder %s383, %s399
    %p401 = scmp.eq.s32.totalorder %s25, 0
    %p402 = por %p400, %p401
    %p403 = scmp.le.s32.totalorder 1, %s19
    %p404 = scmp.lt.s32.totalorder %s19, 5
    %p405 = pnand %p403, %p404
    %p406 = pneg %p405
    // Predicated region
    $region9: #{tpu_custom_call.1} parent=5 // pred_check
      _
    $region10: #{tpu_custom_call.1} parent=5 // pred_check_branch
      %408 = sbr.rel (%p405) target = $region12
    $region11: #{tpu_custom_call.1} parent=5 // pred_region
      %s409 = ssub.s32 %s19, 1
    $region12: #{tpu_custom_call.1} parent=5 // pred_fallthru
      _
    %p410 = scmp.lt.s32.totalorder %s19, 4
    // Predicated region
    $region13: #{tpu_custom_call.1} parent=5 // pred_check
      %p411 = pneg %p410
    $region14: #{tpu_custom_call.1} parent=5 // pred_check_branch
      %413 = sbr.rel (%p411) target = $region16
    $region15: #{tpu_custom_call.1} parent=5 // pred_region
      // Predicated region
      $region17: #{tpu_custom_call.1} parent=15 // pred_check
        %p414 = pneg %p51
      $region18: #{tpu_custom_call.1} parent=15 // pred_check_branch
        %416 = sbr.rel (%p414) target = $region20
      $region19: #{tpu_custom_call.1} parent=15 // pred_region
        %p417 = scmp.lt.s32.totalorder %s26, 1
        %s418 = scalar_select %p417, %s26, 1
        %s419 = smul.addr %s418, 2
        %s420 = smul.addr %s419, 8
        %s421 = scalar_lea.vmem %s0, %s420
      $region20: #{tpu_custom_call.1} parent=15 // pred_fallthru
        _
      // Predicated region
      $region21: #{tpu_custom_call.1} parent=15 // pred_check
        %p422 = pneg %p77
      $region22: #{tpu_custom_call.1} parent=15 // pred_check_branch
        %424 = sbr.rel (%p422) target = $region24
      $region23: #{tpu_custom_call.1} parent=15 // pred_region
        %p425 = scmp.lt.s32.totalorder %s27, 1
        %s426 = scalar_select %p425, %s27, 1
        %s427 = scalar_lea.vmem %s1, %s426
      $region24: #{tpu_custom_call.1} parent=15 // pred_fallthru
        _
      // Predicated region
      $region25: #{tpu_custom_call.1} parent=15 // pred_check
        %p428 = pneg %p103
      $region26: #{tpu_custom_call.1} parent=15 // pred_check_branch
        %430 = sbr.rel (%p428) target = $region28
      $region27: #{tpu_custom_call.1} parent=15 // pred_region
        %p431 = scmp.lt.s32.totalorder %s27, 1
        %s432 = scalar_select %p431, %s27, 1
        %s433 = scalar_lea.vmem %s2, %s432
      $region28: #{tpu_custom_call.1} parent=15 // pred_fallthru
        _
      // Predicated region
      $region29: #{tpu_custom_call.1} parent=15 // pred_check
        %p434 = pneg %p129
      $region30: #{tpu_custom_call.1} parent=15 // pred_check_branch
        %436 = sbr.rel (%p434) target = $region32
      $region31: #{tpu_custom_call.1} parent=15 // pred_region
        %p437 = scmp.lt.s32.totalorder %s27, 1
        %s438 = scalar_select %p437, %s27, 1
        %s439 = smul.addr %s438, 4
        %s440 = smul.addr %s439, 8
        %s441 = scalar_lea.vmem %s3, %s440
      $region32: #{tpu_custom_call.1} parent=15 // pred_fallthru
        _
      // Predicated region
      $region33: #{tpu_custom_call.1} parent=15 // pred_check
        %p442 = pneg %p155
      $region34: #{tpu_custom_call.1} parent=15 // pred_check_branch
        %444 = sbr.rel (%p442) target = $region36
      $region35: #{tpu_custom_call.1} parent=15 // pred_region
        %p445 = scmp.lt.s32.totalorder %s27, 1
        %s446 = scalar_select %p445, %s27, 1
        %s447 = scalar_lea.vmem %s4, %s446
      $region36: #{tpu_custom_call.1} parent=15 // pred_fallthru
        _
      // Predicated region
      $region37: #{tpu_custom_call.1} parent=15 // pred_check
        %p448 = pneg %p181
      $region38: #{tpu_custom_call.1} parent=15 // pred_check_branch
        %450 = sbr.rel (%p448) target = $region40
      $region39: #{tpu_custom_call.1} parent=15 // pred_region
        %p451 = scmp.lt.s32.totalorder %s27, 1
        %s452 = scalar_select %p451, %s27, 1
        %s453 = smul.addr %s452, 4
        %s454 = smul.addr %s453, 8
        %s455 = scalar_lea.vmem %s5, %s454
      $region40: #{tpu_custom_call.1} parent=15 // pred_fallthru
        _
      // Predicated region
      $region41: #{tpu_custom_call.1} parent=15 // pred_check
        %p456 = pneg %p207
      $region42: #{tpu_custom_call.1} parent=15 // pred_check_branch
        %458 = sbr.rel (%p456) target = $region44
      $region43: #{tpu_custom_call.1} parent=15 // pred_region
        %p459 = scmp.lt.s32.totalorder %s27, 1
        %s460 = scalar_select %p459, %s27, 1
        %s461 = scalar_lea.vmem %s6, %s460
      $region44: #{tpu_custom_call.1} parent=15 // pred_fallthru
        _
      // Predicated region
      $region45: #{tpu_custom_call.1} parent=15 // pred_check
        %p462 = pneg %p233
      $region46: #{tpu_custom_call.1} parent=15 // pred_check_branch
        %464 = sbr.rel (%p462) target = $region48
      $region47: #{tpu_custom_call.1} parent=15 // pred_region
        %p465 = scmp.lt.s32.totalorder %s27, 1
        %s466 = scalar_select %p465, %s27, 1
        %s467 = scalar_lea.vmem %s7, %s466
      $region48: #{tpu_custom_call.1} parent=15 // pred_fallthru
        _
      // Predicated region
      $region49: #{tpu_custom_call.1} parent=15 // pred_check
        %p468 = pneg %p259
      $region50: #{tpu_custom_call.1} parent=15 // pred_check_branch
        %470 = sbr.rel (%p468) target = $region52
      $region51: #{tpu_custom_call.1} parent=15 // pred_region
        %p471 = scmp.lt.s32.totalorder %s27, 1
        %s472 = scalar_select %p471, %s27, 1
        %s473 = scalar_lea.vmem %s8, %s472
      $region52: #{tpu_custom_call.1} parent=15 // pred_fallthru
        _
      // Predicated region
      $region53: #{tpu_custom_call.1} parent=15 // pred_check
        %p474 = pneg %p285
      $region54: #{tpu_custom_call.1} parent=15 // pred_check_branch
        %476 = sbr.rel (%p474) target = $region56
      $region55: #{tpu_custom_call.1} parent=15 // pred_region
        %p477 = scmp.lt.s32.totalorder %s27, 1
        %s478 = scalar_select %p477, %s27, 1
        %s479 = smul.addr %s478, 4
        %s480 = smul.addr %s479, 8
        %s481 = scalar_lea.vmem %s9, %s480
      $region56: #{tpu_custom_call.1} parent=15 // pred_fallthru
        _
      // Predicated region
      $region57: #{tpu_custom_call.1} parent=15 // pred_check
        %p482 = pneg %p311
      $region58: #{tpu_custom_call.1} parent=15 // pred_check_branch
        %484 = sbr.rel (%p482) target = $region60
      $region59: #{tpu_custom_call.1} parent=15 // pred_region
        %p485 = scmp.lt.s32.totalorder %s27, 1
        %s486 = scalar_select %p485, %s27, 1
        %s487 = scalar_lea.vmem %s10, %s486
      $region60: #{tpu_custom_call.1} parent=15 // pred_fallthru
        _
      // Predicated region
      $region61: #{tpu_custom_call.1} parent=15 // pred_check
        %p488 = pneg %p337
      $region62: #{tpu_custom_call.1} parent=15 // pred_check_branch
        %490 = sbr.rel (%p488) target = $region64
      $region63: #{tpu_custom_call.1} parent=15 // pred_region
        %p491 = scmp.lt.s32.totalorder %s27, 1
        %s492 = scalar_select %p491, %s27, 1
        %s493 = smul.addr %s492, 8
        %s494 = smul.addr %s493, 8
        %s495 = scalar_lea.vmem %s11, %s494
      $region64: #{tpu_custom_call.1} parent=15 // pred_fallthru
        _
      // Predicated region
      $region65: #{tpu_custom_call.1} parent=15 // pred_check
        %p496 = pneg %p363
      $region66: #{tpu_custom_call.1} parent=15 // pred_check_branch
        %498 = sbr.rel (%p496) target = $region68
      $region67: #{tpu_custom_call.1} parent=15 // pred_region
        %p499 = scmp.lt.s32.totalorder %s27, 1
        %s500 = scalar_select %p499, %s27, 1
        %s501 = scalar_lea.vmem %s12, %s500
      $region68: #{tpu_custom_call.1} parent=15 // pred_fallthru
        _
    $region16: #{tpu_custom_call.1} parent=5 // pred_fallthru
      _
    %p502 = scmp.le.s32.totalorder 1, %s19
    %p503 = scmp.lt.s32.totalorder %s19, 5
    %p504 = pnand %p502, %p503
    %p505 = pneg %p504
    // Predicated region
    $region69: #{tpu_custom_call.1} parent=5 // pred_check
      _
    $region70: #{tpu_custom_call.1} parent=5 // pred_check_branch
      %507 = sbr.rel (%p504) target = $region72
    $region71: #{tpu_custom_call.1} parent=5 // pred_region
      %s508 = ssub.s32 %s19, 1
      %p509 = scmp.lt.s32.totalorder %s28, 1
      %s510 = scalar_select %p509, %s28, 1
      %s511 = smul.addr %s510, 2
      %s512 = smul.addr %s511, 8
      %s513 = scalar_lea.vmem %s0, %s512
      %p514 = pneg %p57
      %p515 = pneg %p54
      %p516 = scmp.lt.s32.totalorder %s29, 1
      %s517 = scalar_select %p516, %s29, 1
      %s518 = scalar_lea.vmem %s1, %s517
      %p519 = pneg %p83
      %p520 = pneg %p80
      %p521 = scmp.lt.s32.totalorder %s29, 1
      %s522 = scalar_select %p521, %s29, 1
      %s523 = scalar_lea.vmem %s2, %s522
      %p524 = pneg %p109
      %p525 = pneg %p106
      %p526 = scmp.lt.s32.totalorder %s29, 1
      %s527 = scalar_select %p526, %s29, 1
      %s528 = smul.addr %s527, 4
      %s529 = smul.addr %s528, 8
      %s530 = scalar_lea.vmem %s3, %s529
      %p531 = pneg %p135
      %p532 = pneg %p132
      %p533 = scmp.lt.s32.totalorder %s29, 1
      %s534 = scalar_select %p533, %s29, 1
      %s535 = scalar_lea.vmem %s4, %s534
      %p536 = pneg %p161
      %p537 = pneg %p158
      %p538 = scmp.lt.s32.totalorder %s29, 1
      %s539 = scalar_select %p538, %s29, 1
      %s540 = smul.addr %s539, 4
      %s541 = smul.addr %s540, 8
      %s542 = scalar_lea.vmem %s5, %s541
      %p543 = pneg %p187
      %p544 = pneg %p184
      %p545 = scmp.lt.s32.totalorder %s29, 1
      %s546 = scalar_select %p545, %s29, 1
      %s547 = scalar_lea.vmem %s6, %s546
      %p548 = pneg %p213
      %p549 = pneg %p210
      %p550 = scmp.lt.s32.totalorder %s29, 1
      %s551 = scalar_select %p550, %s29, 1
      %s552 = scalar_lea.vmem %s7, %s551
      %p553 = pneg %p239
      %p554 = pneg %p236
      %p555 = scmp.lt.s32.totalorder %s29, 1
      %s556 = scalar_select %p555, %s29, 1
      %s557 = scalar_lea.vmem %s8, %s556
      %p558 = pneg %p265
      %p559 = pneg %p262
      %p560 = scmp.lt.s32.totalorder %s29, 1
      %s561 = scalar_select %p560, %s29, 1
      %s562 = smul.addr %s561, 4
      %s563 = smul.addr %s562, 8
      %s564 = scalar_lea.vmem %s9, %s563
      %p565 = pneg %p291
      %p566 = pneg %p288
      %p567 = scmp.lt.s32.totalorder %s29, 1
      %s568 = scalar_select %p567, %s29, 1
      %s569 = scalar_lea.vmem %s10, %s568
      %p570 = pneg %p317
      %p571 = pneg %p314
      %p572 = scmp.lt.s32.totalorder %s29, 1
      %s573 = scalar_select %p572, %s29, 1
      %s574 = smul.addr %s573, 8
      %s575 = smul.addr %s574, 8
      %s576 = scalar_lea.vmem %s11, %s575
      %p577 = pneg %p343
      %p578 = pneg %p340
      %p579 = scmp.lt.s32.totalorder %s29, 1
      %s580 = scalar_select %p579, %s29, 1
      %s581 = scalar_lea.vmem %s12, %s580
      %p582 = pneg %p369
      %p583 = pneg %p366
      %p584 = pneg %p395
      %p585 = pneg %p392
      %p586 = scmp.lt.s32.totalorder %s28, 1
      %s587 = scalar_select %p586, %s28, 1
      %s588 = smul.addr %s587, 2
      %s589 = smul.addr %s588, 8
      %s590 = scalar_lea.vmem %s13, %s589
      %p591 = scmp.lt.s32.totalorder %s28, 1
      %s592 = scalar_select %p591, %s28, 1
      %s593 = smul.addr %s592, 2
      %s594 = smul.addr %s593, 8
      %s595 = scalar_lea.vmem %s0, %s594
      %p596 = scmp.lt.s32.totalorder %s29, 1
      %s597 = scalar_select %p596, %s29, 1
      %s598 = scalar_lea.vmem %s1, %s597
      %p599 = scmp.lt.s32.totalorder %s29, 1
      %s600 = scalar_select %p599, %s29, 1
      %s601 = scalar_lea.vmem %s2, %s600
      %p602 = scmp.lt.s32.totalorder %s29, 1
      %s603 = scalar_select %p602, %s29, 1
      %s604 = smul.addr %s603, 4
      %s605 = smul.addr %s604, 8
      %s606 = scalar_lea.vmem %s3, %s605
      %p607 = scmp.lt.s32.totalorder %s29, 1
      %s608 = scalar_select %p607, %s29, 1
      %s609 = scalar_lea.vmem %s4, %s608
      %p610 = scmp.lt.s32.totalorder %s29, 1
      %s611 = scalar_select %p610, %s29, 1
      %s612 = smul.addr %s611, 4
      %s613 = smul.addr %s612, 8
      %s614 = scalar_lea.vmem %s5, %s613
      %p615 = scmp.lt.s32.totalorder %s29, 1
      %s616 = scalar_select %p615, %s29, 1
      %s617 = scalar_lea.vmem %s6, %s616
      %p618 = scmp.lt.s32.totalorder %s29, 1
      %s619 = scalar_select %p618, %s29, 1
      %s620 = scalar_lea.vmem %s7, %s619
      %p621 = scmp.lt.s32.totalorder %s29, 1
      %s622 = scalar_select %p621, %s29, 1
      %s623 = scalar_lea.vmem %s8, %s622
      %p624 = scmp.lt.s32.totalorder %s29, 1
      %s625 = scalar_select %p624, %s29, 1
      %s626 = smul.addr %s625, 4
      %s627 = smul.addr %s626, 8
      %s628 = scalar_lea.vmem %s9, %s627
      %p629 = scmp.lt.s32.totalorder %s29, 1
      %s630 = scalar_select %p629, %s29, 1
      %s631 = scalar_lea.vmem %s10, %s630
      %p632 = scmp.lt.s32.totalorder %s29, 1
      %s633 = scalar_select %p632, %s29, 1
      %s634 = smul.addr %s633, 8
      %s635 = smul.addr %s634, 8
      %s636 = scalar_lea.vmem %s11, %s635
      %p637 = scmp.lt.s32.totalorder %s29, 1
      %s638 = scalar_select %p637, %s29, 1
      %s639 = scalar_lea.vmem %s12, %s638
      %p640 = scmp.lt.s32.totalorder %s28, 1
      %s641 = scalar_select %p640, %s28, 1
      %s642 = smul.addr %s641, 2
      %s643 = smul.addr %s642, 8
      %s644 = scalar_lea.vmem %s13, %s643
      %p645 = scmp.eq.s32.totalorder %s29, 0
      // Predicated region
      $region73: #{tpu_custom_call.1} parent=71 // pred_check
        %p646 = pneg %p645
      $region74: #{tpu_custom_call.1} parent=71 // pred_check_branch
        %648 = sbr.rel (%p646) target = $region76
      $region75: #{tpu_custom_call.1} parent=71 // pred_region
        %v649 = vld [vmem:[%s595] sm:$0xff]
        %v650 = vld [vmem:[%s595 + $0x8] sm:$0x1]
        %vm651 = vcmask 261120
        %652 = vst.msk [vmem:[%s644] sm:$0xff] %vm651, %v649
        %vm653 = vcmask 253952
        %654 = vst.msk [vmem:[%s644 + $0x8] sm:$0x1] %vm653, %v650
      $region76: #{tpu_custom_call.1} parent=71 // pred_fallthru
        _
      %v655 = vld [vmem:[%s644] sm:$0xff]
      %v656 = vld [vmem:[%s644 + $0x8] sm:$0x1]
      %v657 = vld [vmem:[%s598] sm:$0x1]
      %v658 = vld [vmem:[%s601] sm:$0x1]
      %vm659 = vcmask 261120
      %v660 = vsel %vm659, %v655, 0.0
      %661 = vadd.xlane.f32.xlu0 %v660
      %v662 = vpop.xlane.xlu0 %661
      %vm663 = vcmask 253952
      %v664 = vsel %vm663, %v656, 0.0
      %665 = vadd.xlane.f32.xlu0 %v664
      %v666 = vpop.xlane.xlu0 %665
      %v667 = vrcp.pop 32.0
      %v668 = vmul.f32 %v662, %v667
      %v669 = vmul.f32 %v666, %v667
      %v670 = vsub.f32 %v655, %v668
      %v671 = vsub.f32 %v656, %v669
      %v672 = vmul.f32 %v670, %v670
      %v673 = vmul.f32 %v671, %v671
      %v674 = vsel %vm659, %v672, 0.0
      %675 = vadd.xlane.f32.xlu0 %v674
      %v676 = vpop.xlane.xlu0 %675
      %v677 = vsel %vm663, %v673, 0.0
      %678 = vadd.xlane.f32.xlu0 %v677
      %v679 = vpop.xlane.xlu0 %678
      %v680 = vmul.f32 %v676, %v667
      %v681 = vmul.f32 %v679, %v667
      %v682 = vadd.f32 %v680, 1e-05
      %v683 = vadd.f32 %v681, 1e-05
      %v684 = vrsqrt.pop %v682
      %v685 = vrsqrt.pop %v683
      %v686 = vmul.f32 %v670, %v684
      %v687 = vmul.f32 %v671, %v685
      %v689 = vlaneseq
      %v690 = vshrl.u32 %v689, 7
      %v691 = vsub.s32 0, %v690
      %v692 = vrot.slane %v657, %v691
      %v694 = vmul.f32 %v686, %v692
      %v695 = vmul.f32 %v687, %v692
      %v697 = vlaneseq
      %v698 = vshrl.u32 %v697, 7
      %v699 = vsub.s32 0, %v698
      %v700 = vrot.slane %v658, %v699
      %v702 = vadd.f32 %v694, %v700
      %v703 = vadd.f32 %v695, %v700
      %v704 = vld [vmem:[%s606] sm:$0xff]
      %v705 = vld [vmem:[%s606 + $0x8] sm:$0xff]
      %v706 = vld [vmem:[%s606 + $0x10] sm:$0xff]
      %v707 = vld [vmem:[%s606 + $0x18] sm:$0xff]
      %v708 = vld [vmem:[%s609] sm:$0x1]
      %v710 = vlaneseq
      %v711 = vshrl.u32 %v710, 7
      %v712 = vsub.s32 0, %v711
      %v713 = vrot.slane %v708, %v712
      %v716 = vsel %vm659, %v702, 0
      %v719 = vsel %vm659, %v703, 0
      %721 = vmatprep.subr.mxu0 0.0
      %722 = vmatpush1.msra.mxu0 %v704
      %723 = vmatprep.subr.mxu0 0.0
      %724 = vmatpush1.msra.mxu0 %v705
      %725 = vmatprep.subr.mxu0 0.0
      %726 = vmatpush1.msra.mxu0 %v706
      %727 = vmatprep.subr.mxu0 0.0
      %728 = vmatpush1.msra.mxu0 %v707
      %729 = vmatprep.subr.mxu0 0.0
      %730 = vmatpush1.msra.mxu0 0.0
      %731 = vmatprep.subr.mxu0 0.0
      %732 = vmatpush1.msra.mxu0 0.0
      %733 = vmatprep.subr.mxu0 0.0
      %734 = vmatpush1.msra.mxu0 0.0
      %735 = vmatprep.subr.mxu0 0.0
      %736 = vmatpush1.msra.mxu0 0.0
      %737 = vmatprep.subr.mxu0 0.0
      %738 = vmatpush1.msra.mxu0 0.0
      %739 = vmatprep.subr.mxu0 0.0
      %740 = vmatpush1.msra.mxu0 0.0
      %741 = vmatprep.subr.mxu0 0.0
      %742 = vmatpush1.msra.mxu0 0.0
      %743 = vmatprep.subr.mxu0 0.0
      %744 = vmatpush1.msra.mxu0 0.0
      %745 = vmatprep.subr.mxu0 0.0
      %746 = vmatpush1.msra.mxu0 0.0
      %747 = vmatprep.subr.mxu0 0.0
      %748 = vmatpush1.msra.mxu0 0.0
      %749 = vmatprep.subr.mxu0 0.0
      %750 = vmatpush1.msra.mxu0 0.0
      %751 = vmatprep.subr.mxu0 0.0
      %752 = vmatpush1.msra.mxu0 0.0
      %753 = vmatprep.subr.mxu0 0.0
      %754 = vmatpush1.msra.mxu0 0.0
      %755 = vmatprep.subr.mxu0 0.0
      %756 = vmatpush1.msra.mxu0 0.0
      %757 = vmatprep.subr.mxu0 0.0
      %758 = vmatpush1.msra.mxu0 0.0
      %759 = vmatprep.subr.mxu0 0.0
      %760 = vmatpush1.msra.mxu0 0.0
      %761 = vmatprep.subr.mxu0 0.0
      %762 = vmatpush1.msra.mxu0 0.0
      %763 = vmatprep.subr.mxu0 0.0
      %764 = vmatpush1.msra.mxu0 0.0
      %765 = vmatprep.subr.mxu0 0.0
      %766 = vmatpush1.msra.mxu0 0.0
      %767 = vmatprep.subr.mxu0 0.0
      %768 = vmatpush1.msra.mxu0 0.0
      %769 = vmatprep.subr.mxu0 0.0
      %770 = vmatpush1.msra.mxu0 0.0
      %771 = vmatprep.subr.mxu0 0.0
      %772 = vmatpush1.msra.mxu0 0.0
      %773 = vmatprep.subr.mxu0 0.0
      %774 = vmatpush1.msra.mxu0 0.0
      %775 = vmatprep.subr.mxu0 0.0
      %776 = vmatpush1.msra.mxu0 0.0
      %777 = vmatprep.subr.mxu0 0.0
      %778 = vmatpush1.msra.mxu0 0.0
      %779 = vmatprep.subr.mxu0 0.0
      %780 = vmatpush1.msra.mxu0 0.0
      %781 = vmatprep.subr.mxu0 0.0
      %782 = vmatpush1.msra.mxu0 0.0
      %783 = vmatprep.subr.mxu0 0.0
      %784 = vmatpush1.msra.mxu0 0.0
      %785 = vmatprep.mubr.f32.mxu0 0.0
      %786 = vmatmul.mubr.f32.gmra.mrb[0].mxu0 %v716
      %v787 = vpop.f32.mrb[0].mxu0
      %v788 = vadd.f32 %v713, %v787
      %v789 = vpop.f32.mrb[0].mxu0
      %790 = vmatprep.mubr.f32.mxu0 0.0
      %791 = vmatmul.mubr.f32.gmra.mrb[0].mxu0 %v719
      %v792 = vpop.f32.mrb[0].mxu0
      %v793 = vadd.f32 %v713, %v792
      %v794 = vpop.f32.mrb[0].mxu0
      %795 = vdwg.mxu0
      %v796 = vld [vmem:[%s614] sm:$0xff]
      %v797 = vld [vmem:[%s614 + $0x8] sm:$0xff]
      %v798 = vld [vmem:[%s614 + $0x10] sm:$0xff]
      %v799 = vld [vmem:[%s614 + $0x18] sm:$0xff]
      %v800 = vmul.f32 %v788, 0.35355338
      %v801 = vmul.f32 %v793, 0.35355338
      %804 = vrot.lane.b32.xlu0 %v788, 96
      %v805 = vpop.permute.xlu0 %804
      %806 = vrot.lane.b32.xlu0 %v793, 96
      %v807 = vpop.permute.xlu0 %806
      %vm808 = vcmask 64512
      %v810 = vsel %vm808, %v800, 0
      %v813 = vsel %vm808, %v801, 0
      %v815 = vsel %vm808, %v805, 0
      %v817 = vsel %vm808, %v807, 0
      %819 = vmatprep.subr.mxu0 0.0
      %820 = vmatpush1.xpose.msra.mxu0 %v815
      %821 = vmatprep.subr.mxu0 0.0
      %822 = vmatpush1.xpose.msra.mxu0 %v817
      %823 = vmatprep.subr.mxu0 0.0
      %824 = vmatpush1.xpose.msra.mxu0 0.0
      %825 = vmatprep.subr.mxu0 0.0
      %826 = vmatpush1.xpose.msra.mxu0 0.0
      %827 = vmatprep.subr.mxu0 0.0
      %828 = vmatpush1.xpose.msra.mxu0 0.0
      %829 = vmatprep.subr.mxu0 0.0
      %830 = vmatpush1.xpose.msra.mxu0 0.0
      %831 = vmatprep.subr.mxu0 0.0
      %832 = vmatpush1.xpose.msra.mxu0 0.0
      %833 = vmatprep.subr.mxu0 0.0
      %834 = vmatpush1.xpose.msra.mxu0 0.0
      %835 = vmatprep.subr.mxu0 0.0
      %836 = vmatpush1.xpose.msra.mxu0 0.0
      %837 = vmatprep.subr.mxu0 0.0
      %838 = vmatpush1.xpose.msra.mxu0 0.0
      %839 = vmatprep.subr.mxu0 0.0
      %840 = vmatpush1.xpose.msra.mxu0 0.0
      %841 = vmatprep.subr.mxu0 0.0
      %842 = vmatpush1.xpose.msra.mxu0 0.0
      %843 = vmatprep.subr.mxu0 0.0
      %844 = vmatpush1.xpose.msra.mxu0 0.0
      %845 = vmatprep.subr.mxu0 0.0
      %846 = vmatpush1.xpose.msra.mxu0 0.0
      %847 = vmatprep.subr.mxu0 0.0
      %848 = vmatpush1.xpose.msra.mxu0 0.0
      %849 = vmatprep.subr.mxu0 0.0
      %850 = vmatpush1.xpose.msra.mxu0 0.0
      %851 = vmatprep.subr.mxu0 0.0
      %852 = vmatpush1.xpose.msra.mxu0 0.0
      %853 = vmatprep.subr.mxu0 0.0
      %854 = vmatpush1.xpose.msra.mxu0 0.0
      %855 = vmatprep.subr.mxu0 0.0
      %856 = vmatpush1.xpose.msra.mxu0 0.0
      %857 = vmatprep.subr.mxu0 0.0
      %858 = vmatpush1.xpose.msra.mxu0 0.0
      %859 = vmatprep.subr.mxu0 0.0
      %860 = vmatpush1.xpose.msra.mxu0 0.0
      %861 = vmatprep.subr.mxu0 0.0
      %862 = vmatpush1.xpose.msra.mxu0 0.0
      %863 = vmatprep.subr.mxu0 0.0
      %864 = vmatpush1.xpose.msra.mxu0 0.0
      %865 = vmatprep.subr.mxu0 0.0
      %866 = vmatpush1.xpose.msra.mxu0 0.0
      %867 = vmatprep.subr.mxu0 0.0
      %868 = vmatpush1.xpose.msra.mxu0 0.0
      %869 = vmatprep.subr.mxu0 0.0
      %870 = vmatpush1.xpose.msra.mxu0 0.0
      %871 = vmatprep.subr.mxu0 0.0
      %872 = vmatpush1.xpose.msra.mxu0 0.0
      %873 = vmatprep.subr.mxu0 0.0
      %874 = vmatpush1.xpose.msra.mxu0 0.0
      %875 = vmatprep.subr.mxu0 0.0
      %876 = vmatpush1.xpose.msra.mxu0 0.0
      %877 = vmatprep.subr.mxu0 0.0
      %878 = vmatpush1.xpose.msra.mxu0 0.0
      %879 = vmatprep.subr.mxu0 0.0
      %880 = vmatpush1.xpose.msra.mxu0 0.0
      %881 = vmatprep.subr.mxu0 0.0
      %882 = vmatpush1.xpose.msra.mxu0 0.0
      %883 = vmatprep.mubr.f32.mxu0 0.0
      %884 = vmatmul.mubr.f32.gmra.mrb[0].mxu0 %v810
      %v885 = vpop.f32.mrb[0].mxu0
      %v886 = vadd.f32 0.0, %v885
      %v887 = vpop.f32.mrb[0].mxu0
      %888 = vmatprep.mubr.f32.mxu0 0.0
      %889 = vmatmul.mubr.f32.gmra.mrb[0].mxu0 %v813
      %v890 = vpop.f32.mrb[0].mxu0
      %v891 = vadd.f32 0.0, %v890
      %v892 = vpop.f32.mrb[0].mxu0
      %893 = vdwg.mxu0
      %vm894 = vcmask 72704
      %v895 = vsel %vm894, %v886, -inf
      %896 = vmax.xlane.f32.xlu0 %v895
      %v897 = vpop.xlane.xlu0 %896
      %vm898 = vcmask 65536
      %v899 = vsel %vm898, %v891, -inf
      %900 = vmax.xlane.f32.xlu0 %v899
      %v901 = vpop.xlane.xlu0 %900
      %v902 = vsub.f32 %v886, %v897
      %v903 = vsub.f32 %v891, %v901
      %v904 = vmul.f32 %v902, 1.442695
      %v905 = vpow.pop %v904
      %v906 = vmul.f32 %v903, 1.442695
      %v907 = vpow.pop %v906
      %v908 = vsel %vm894, %v905, 0.0
      %909 = vadd.xlane.f32.xlu0 %v908
      %v910 = vpop.xlane.xlu0 %909
      %v911 = vsel %vm898, %v907, 0.0
      %912 = vadd.xlane.f32.xlu0 %v911
      %v913 = vpop.xlane.xlu0 %912
      %v914 = vrcp.pop %v910
      %v915 = vmul.f32 %v905, %v914
      %v916 = vrcp.pop %v913
      %v917 = vmul.f32 %v907, %v916
      %918 = vrot.lane.b32.xlu0 %v788, 64
      %v919 = vpop.permute.xlu0 %918
      %920 = vrot.lane.b32.xlu0 %v793, 64
      %v921 = vpop.permute.xlu0 %920
      %v924 = vsel %vm894, %v915, 0
      %v927 = vsel %vm894, %v917, 0
      %vm929 = vcmask 1040384
      %v930 = vsel %vm929, %v921, 0
      %932 = vmatprep.subr.mxu0 0.0
      %933 = vmatpush1.msra.mxu0 %v919
      %934 = vmatprep.subr.mxu0 0.0
      %935 = vmatpush1.msra.mxu0 %v930
      %936 = vmatprep.subr.mxu0 0.0
      %937 = vmatpush1.msra.mxu0 0.0
      %938 = vmatprep.subr.mxu0 0.0
      %939 = vmatpush1.msra.mxu0 0.0
      %940 = vmatprep.subr.mxu0 0.0
      %941 = vmatpush1.msra.mxu0 0.0
      %942 = vmatprep.subr.mxu0 0.0
      %943 = vmatpush1.msra.mxu0 0.0
      %944 = vmatprep.subr.mxu0 0.0
      %945 = vmatpush1.msra.mxu0 0.0
      %946 = vmatprep.subr.mxu0 0.0
      %947 = vmatpush1.msra.mxu0 0.0
      %948 = vmatprep.subr.mxu0 0.0
      %949 = vmatpush1.msra.mxu0 0.0
      %950 = vmatprep.subr.mxu0 0.0
      %951 = vmatpush1.msra.mxu0 0.0
      %952 = vmatprep.subr.mxu0 0.0
      %953 = vmatpush1.msra.mxu0 0.0
      %954 = vmatprep.subr.mxu0 0.0
      %955 = vmatpush1.msra.mxu0 0.0
      %956 = vmatprep.subr.mxu0 0.0
      %957 = vmatpush1.msra.mxu0 0.0
      %958 = vmatprep.subr.mxu0 0.0
      %959 = vmatpush1.msra.mxu0 0.0
      %960 = vmatprep.subr.mxu0 0.0
      %961 = vmatpush1.msra.mxu0 0.0
      %962 = vmatprep.subr.mxu0 0.0
      %963 = vmatpush1.msra.mxu0 0.0
      %964 = vmatprep.subr.mxu0 0.0
      %965 = vmatpush1.msra.mxu0 0.0
      %966 = vmatprep.subr.mxu0 0.0
      %967 = vmatpush1.msra.mxu0 0.0
      %968 = vmatprep.subr.mxu0 0.0
      %969 = vmatpush1.msra.mxu0 0.0
      %970 = vmatprep.subr.mxu0 0.0
      %971 = vmatpush1.msra.mxu0 0.0
      %972 = vmatprep.subr.mxu0 0.0
      %973 = vmatpush1.msra.mxu0 0.0
      %974 = vmatprep.subr.mxu0 0.0
      %975 = vmatpush1.msra.mxu0 0.0
      %976 = vmatprep.subr.mxu0 0.0
      %977 = vmatpush1.msra.mxu0 0.0
      %978 = vmatprep.subr.mxu0 0.0
      %979 = vmatpush1.msra.mxu0 0.0
      %980 = vmatprep.subr.mxu0 0.0
      %981 = vmatpush1.msra.mxu0 0.0
      %982 = vmatprep.subr.mxu0 0.0
      %983 = vmatpush1.msra.mxu0 0.0
      %984 = vmatprep.subr.mxu0 0.0
      %985 = vmatpush1.msra.mxu0 0.0
      %986 = vmatprep.subr.mxu0 0.0
      %987 = vmatpush1.msra.mxu0 0.0
      %988 = vmatprep.subr.mxu0 0.0
      %989 = vmatpush1.msra.mxu0 0.0
      %990 = vmatprep.subr.mxu0 0.0
      %991 = vmatpush1.msra.mxu0 0.0
      %992 = vmatprep.subr.mxu0 0.0
      %993 = vmatpush1.msra.mxu0 0.0
      %994 = vmatprep.subr.mxu0 0.0
      %995 = vmatpush1.msra.mxu0 0.0
      %996 = vmatprep.mubr.f32.mxu0 0.0
      %997 = vmatmul.mubr.f32.gmra.mrb[0].mxu0 %v924
      %v998 = vpop.f32.mrb[0].mxu0
      %v999 = vadd.f32 0.0, %v998
      %v1000 = vpop.f32.mrb[0].mxu0
      %1001 = vmatprep.mubr.f32.mxu0 0.0
      %1002 = vmatmul.mubr.f32.gmra.mrb[0].mxu0 %v927
      %v1003 = vpop.f32.mrb[0].mxu0
      %v1004 = vadd.f32 0.0, %v1003
      %v1005 = vpop.f32.mrb[0].mxu0
      %1006 = vdwg.mxu0
      %1007 = vrot.lane.b32.xlu0 %v800, 120
      %v1008 = vpop.permute.xlu0 %1007
      %1009 = vrot.lane.b32.xlu0 %v801, 120
      %v1010 = vpop.permute.xlu0 %1009
      %1011 = vrot.lane.b32.xlu0 %v788, 88
      %v1012 = vpop.permute.xlu0 %1011
      %1013 = vrot.lane.b32.xlu0 %v793, 88
      %v1014 = vpop.permute.xlu0 %1013
      %v1015 = vsel %vm808, %v1008, 0
      %v1017 = vsel %vm808, %v1010, 0
      %v1019 = vsel %vm808, %v1012, 0
      %v1021 = vsel %vm808, %v1014, 0
      %1023 = vmatprep.subr.mxu0 0.0
      %1024 = vmatpush1.xpose.msra.mxu0 %v1019
      %1025 = vmatprep.subr.mxu0 0.0
      %1026 = vmatpush1.xpose.msra.mxu0 %v1021
      %1027 = vmatprep.subr.mxu0 0.0
      %1028 = vmatpush1.xpose.msra.mxu0 0.0
      %1029 = vmatprep.subr.mxu0 0.0
      %1030 = vmatpush1.xpose.msra.mxu0 0.0
      %1031 = vmatprep.subr.mxu0 0.0
      %1032 = vmatpush1.xpose.msra.mxu0 0.0
      %1033 = vmatprep.subr.mxu0 0.0
      %1034 = vmatpush1.xpose.msra.mxu0 0.0
      %1035 = vmatprep.subr.mxu0 0.0
      %1036 = vmatpush1.xpose.msra.mxu0 0.0
      %1037 = vmatprep.subr.mxu0 0.0
      %1038 = vmatpush1.xpose.msra.mxu0 0.0
      %1039 = vmatprep.subr.mxu0 0.0
      %1040 = vmatpush1.xpose.msra.mxu0 0.0
      %1041 = vmatprep.subr.mxu0 0.0
      %1042 = vmatpush1.xpose.msra.mxu0 0.0
      %1043 = vmatprep.subr.mxu0 0.0
      %1044 = vmatpush1.xpose.msra.mxu0 0.0
      %1045 = vmatprep.subr.mxu0 0.0
      %1046 = vmatpush1.xpose.msra.mxu0 0.0
      %1047 = vmatprep.subr.mxu0 0.0
      %1048 = vmatpush1.xpose.msra.mxu0 0.0
      %1049 = vmatprep.subr.mxu0 0.0
      %1050 = vmatpush1.xpose.msra.mxu0 0.0
      %1051 = vmatprep.subr.mxu0 0.0
      %1052 = vmatpush1.xpose.msra.mxu0 0.0
      %1053 = vmatprep.subr.mxu0 0.0
      %1054 = vmatpush1.xpose.msra.mxu0 0.0
      %1055 = vmatprep.subr.mxu0 0.0
      %1056 = vmatpush1.xpose.msra.mxu0 0.0
      %1057 = vmatprep.subr.mxu0 0.0
      %1058 = vmatpush1.xpose.msra.mxu0 0.0
      %1059 = vmatprep.subr.mxu0 0.0
      %1060 = vmatpush1.xpose.msra.mxu0 0.0
      %1061 = vmatprep.subr.mxu0 0.0
      %1062 = vmatpush1.xpose.msra.mxu0 0.0
      %1063 = vmatprep.subr.mxu0 0.0
      %1064 = vmatpush1.xpose.msra.mxu0 0.0
      %1065 = vmatprep.subr.mxu0 0.0
      %1066 = vmatpush1.xpose.msra.mxu0 0.0
      %1067 = vmatprep.subr.mxu0 0.0
      %1068 = vmatpush1.xpose.msra.mxu0 0.0
      %1069 = vmatprep.subr.mxu0 0.0
      %1070 = vmatpush1.xpose.msra.mxu0 0.0
      %1071 = vmatprep.subr.mxu0 0.0
      %1072 = vmatpush1.xpose.msra.mxu0 0.0
      %1073 = vmatprep.subr.mxu0 0.0
      %1074 = vmatpush1.xpose.msra.mxu0 0.0
      %1075 = vmatprep.subr.mxu0 0.0
      %1076 = vmatpush1.xpose.msra.mxu0 0.0
      %1077 = vmatprep.subr.mxu0 0.0
      %1078 = vmatpush1.xpose.msra.mxu0 0.0
      %1079 = vmatprep.subr.mxu0 0.0
      %1080 = vmatpush1.xpose.msra.mxu0 0.0
      %1081 = vmatprep.subr.mxu0 0.0
      %1082 = vmatpush1.xpose.msra.mxu0 0.0
      %1083 = vmatprep.subr.mxu0 0.0
      %1084 = vmatpush1.xpose.msra.mxu0 0.0
      %1085 = vmatprep.subr.mxu0 0.0
      %1086 = vmatpush1.xpose.msra.mxu0 0.0
      %1087 = vmatprep.mubr.f32.mxu0 0.0
      %1088 = vmatmul.mubr.f32.gmra.mrb[0].mxu0 %v1015
      %v1089 = vpop.f32.mrb[0].mxu0
      %v1090 = vadd.f32 0.0, %v1089
      %v1091 = vpop.f32.mrb[0].mxu0
      %1092 = vmatprep.mubr.f32.mxu0 0.0
      %1093 = vmatmul.mubr.f32.gmra.mrb[0].mxu0 %v1017
      %v1094 = vpop.f32.mrb[0].mxu0
      %v1095 = vadd.f32 0.0, %v1094
      %v1096 = vpop.f32.mrb[0].mxu0
      %1097 = vdwg.mxu0
      %v1098 = vsel %vm894, %v1090, -inf
      %1099 = vmax.xlane.f32.xlu0 %v1098
      %v1100 = vpop.xlane.xlu0 %1099
      %v1101 = vsel %vm898, %v1095, -inf
      %1102 = vmax.xlane.f32.xlu0 %v1101
      %v1103 = vpop.xlane.xlu0 %1102
      %v1104 = vsub.f32 %v1090, %v1100
      %v1105 = vsub.f32 %v1095, %v1103
      %v1106 = vmul.f32 %v1104, 1.442695
      %v1107 = vpow.pop %v1106
      %v1108 = vmul.f32 %v1105, 1.442695
      %v1109 = vpow.pop %v1108
      %v1110 = vsel %vm894, %v1107, 0.0
      %1111 = vadd.xlane.f32.xlu0 %v1110
      %v1112 = vpop.xlane.xlu0 %1111
      %v1113 = vsel %vm898, %v1109, 0.0
      %1114 = vadd.xlane.f32.xlu0 %v1113
      %v1115 = vpop.xlane.xlu0 %1114
      %v1116 = vrcp.pop %v1112
      %v1117 = vmul.f32 %v1107, %v1116
      %v1118 = vrcp.pop %v1115
      %v1119 = vmul.f32 %v1109, %v1118
      %1120 = vrot.lane.b32.xlu0 %v788, 56
      %v1121 = vpop.permute.xlu0 %1120
      %1122 = vrot.lane.b32.xlu0 %v793, 56
      %v1123 = vpop.permute.xlu0 %1122
      %v1126 = vsel %vm894, %v1117, 0
      %v1129 = vsel %vm894, %v1119, 0
      %v1131 = vsel %vm929, %v1123, 0
      %1133 = vmatprep.subr.mxu0 0.0
      %1134 = vmatpush1.msra.mxu0 %v1121
      %1135 = vmatprep.subr.mxu0 0.0
      %1136 = vmatpush1.msra.mxu0 %v1131
      %1137 = vmatprep.subr.mxu0 0.0
      %1138 = vmatpush1.msra.mxu0 0.0
      %1139 = vmatprep.subr.mxu0 0.0
      %1140 = vmatpush1.msra.mxu0 0.0
      %1141 = vmatprep.subr.mxu0 0.0
      %1142 = vmatpush1.msra.mxu0 0.0
      %1143 = vmatprep.subr.mxu0 0.0
      %1144 = vmatpush1.msra.mxu0 0.0
      %1145 = vmatprep.subr.mxu0 0.0
      %1146 = vmatpush1.msra.mxu0 0.0
      %1147 = vmatprep.subr.mxu0 0.0
      %1148 = vmatpush1.msra.mxu0 0.0
      %1149 = vmatprep.subr.mxu0 0.0
      %1150 = vmatpush1.msra.mxu0 0.0
      %1151 = vmatprep.subr.mxu0 0.0
      %1152 = vmatpush1.msra.mxu0 0.0
      %1153 = vmatprep.subr.mxu0 0.0
      %1154 = vmatpush1.msra.mxu0 0.0
      %1155 = vmatprep.subr.mxu0 0.0
      %1156 = vmatpush1.msra.mxu0 0.0
      %1157 = vmatprep.subr.mxu0 0.0
      %1158 = vmatpush1.msra.mxu0 0.0
      %1159 = vmatprep.subr.mxu0 0.0
      %1160 = vmatpush1.msra.mxu0 0.0
      %1161 = vmatprep.subr.mxu0 0.0
      %1162 = vmatpush1.msra.mxu0 0.0
      %1163 = vmatprep.subr.mxu0 0.0
      %1164 = vmatpush1.msra.mxu0 0.0
      %1165 = vmatprep.subr.mxu0 0.0
      %1166 = vmatpush1.msra.mxu0 0.0
      %1167 = vmatprep.subr.mxu0 0.0
      %1168 = vmatpush1.msra.mxu0 0.0
      %1169 = vmatprep.subr.mxu0 0.0
      %1170 = vmatpush1.msra.mxu0 0.0
      %1171 = vmatprep.subr.mxu0 0.0
      %1172 = vmatpush1.msra.mxu0 0.0
      %1173 = vmatprep.subr.mxu0 0.0
      %1174 = vmatpush1.msra.mxu0 0.0
      %1175 = vmatprep.subr.mxu0 0.0
      %1176 = vmatpush1.msra.mxu0 0.0
      %1177 = vmatprep.subr.mxu0 0.0
      %1178 = vmatpush1.msra.mxu0 0.0
      %1179 = vmatprep.subr.mxu0 0.0
      %1180 = vmatpush1.msra.mxu0 0.0
      %1181 = vmatprep.subr.mxu0 0.0
      %1182 = vmatpush1.msra.mxu0 0.0
      %1183 = vmatprep.subr.mxu0 0.0
      %1184 = vmatpush1.msra.mxu0 0.0
      %1185 = vmatprep.subr.mxu0 0.0
      %1186 = vmatpush1.msra.mxu0 0.0
      %1187 = vmatprep.subr.mxu0 0.0
      %1188 = vmatpush1.msra.mxu0 0.0
      %1189 = vmatprep.subr.mxu0 0.0
      %1190 = vmatpush1.msra.mxu0 0.0
      %1191 = vmatprep.subr.mxu0 0.0
      %1192 = vmatpush1.msra.mxu0 0.0
      %1193 = vmatprep.subr.mxu0 0.0
      %1194 = vmatpush1.msra.mxu0 0.0
      %1195 = vmatprep.subr.mxu0 0.0
      %1196 = vmatpush1.msra.mxu0 0.0
      %1197 = vmatprep.mubr.f32.mxu0 0.0
      %1198 = vmatmul.mubr.f32.gmra.mrb[0].mxu0 %v1126
      %v1199 = vpop.f32.mrb[0].mxu0
      %v1200 = vadd.f32 0.0, %v1199
      %v1201 = vpop.f32.mrb[0].mxu0
      %1202 = vmatprep.mubr.f32.mxu0 0.0
      %1203 = vmatmul.mubr.f32.gmra.mrb[0].mxu0 %v1129
      %v1204 = vpop.f32.mrb[0].mxu0
      %v1205 = vadd.f32 0.0, %v1204
      %v1206 = vpop.f32.mrb[0].mxu0
      %1207 = vdwg.mxu0
      %v1209 = vsel %vm808, %v1200, 0
      %v1212 = vsel %vm808, %v1205, 0
      %1214 = vmatprep.subr.mxu0 0.0
      %1215 = vmatpush1.msra.mxu0 %v797
      %1216 = vmatprep.subr.mxu0 0.0
      %1217 = vmatpush1.msra.mxu0 0.0
      %1218 = vmatprep.subr.mxu0 0.0
      %1219 = vmatpush1.msra.mxu0 0.0
      %1220 = vmatprep.subr.mxu0 0.0
      %1221 = vmatpush1.msra.mxu0 0.0
      %1222 = vmatprep.subr.mxu0 0.0
      %1223 = vmatpush1.msra.mxu0 0.0
      %1224 = vmatprep.subr.mxu0 0.0
      %1225 = vmatpush1.msra.mxu0 0.0
      %1226 = vmatprep.subr.mxu0 0.0
      %1227 = vmatpush1.msra.mxu0 0.0
      %1228 = vmatprep.subr.mxu0 0.0
      %1229 = vmatpush1.msra.mxu0 0.0
      %1230 = vmatprep.subr.mxu0 0.0
      %1231 = vmatpush1.msra.mxu0 0.0
      %1232 = vmatprep.subr.mxu0 0.0
      %1233 = vmatpush1.msra.mxu0 0.0
      %1234 = vmatprep.subr.mxu0 0.0
      %1235 = vmatpush1.msra.mxu0 0.0
      %1236 = vmatprep.subr.mxu0 0.0
      %1237 = vmatpush1.msra.mxu0 0.0
      %1238 = vmatprep.subr.mxu0 0.0
      %1239 = vmatpush1.msra.mxu0 0.0
      %1240 = vmatprep.subr.mxu0 0.0
      %1241 = vmatpush1.msra.mxu0 0.0
      %1242 = vmatprep.subr.mxu0 0.0
      %1243 = vmatpush1.msra.mxu0 0.0
      %1244 = vmatprep.subr.mxu0 0.0
      %1245 = vmatpush1.msra.mxu0 0.0
      %1246 = vmatprep.subr.mxu0 0.0
      %1247 = vmatpush1.msra.mxu0 0.0
      %1248 = vmatprep.subr.mxu0 0.0
      %1249 = vmatpush1.msra.mxu0 0.0
      %1250 = vmatprep.subr.mxu0 0.0
      %1251 = vmatpush1.msra.mxu0 0.0
      %1252 = vmatprep.subr.mxu0 0.0
      %1253 = vmatpush1.msra.mxu0 0.0
      %1254 = vmatprep.subr.mxu0 0.0
      %1255 = vmatpush1.msra.mxu0 0.0
      %1256 = vmatprep.subr.mxu0 0.0
      %1257 = vmatpush1.msra.mxu0 0.0
      %1258 = vmatprep.subr.mxu0 0.0
      %1259 = vmatpush1.msra.mxu0 0.0
      %1260 = vmatprep.subr.mxu0 0.0
      %1261 = vmatpush1.msra.mxu0 0.0
      %1262 = vmatprep.subr.mxu0 0.0
      %1263 = vmatpush1.msra.mxu0 0.0
      %1264 = vmatprep.subr.mxu0 0.0
      %1265 = vmatpush1.msra.mxu0 0.0
      %1266 = vmatprep.subr.mxu0 0.0
      %1267 = vmatpush1.msra.mxu0 0.0
      %1268 = vmatprep.subr.mxu0 0.0
      %1269 = vmatpush1.msra.mxu0 0.0
      %1270 = vmatprep.subr.mxu0 0.0
      %1271 = vmatpush1.msra.mxu0 0.0
      %1272 = vmatprep.subr.mxu0 0.0
      %1273 = vmatpush1.msra.mxu0 0.0
      %1274 = vmatprep.subr.mxu0 0.0
      %1275 = vmatpush1.msra.mxu0 0.0
      %1276 = vmatprep.subr.mxu0 0.0
      %1277 = vmatpush1.msra.mxu0 0.0
      %1278 = vmatprep.mubr.f32.mxu0 0.0
      %1279 = vmatmul.mubr.f32.gmra.mrb[0].mxu0 %v1209
      %v1280 = vpop.f32.mrb[0].mxu0
      %v1281 = vadd.f32 0.0, %v1280
      %v1282 = vpop.f32.mrb[0].mxu0
      %1283 = vmatprep.mubr.f32.mxu0 0.0
      %1284 = vmatmul.mubr.f32.gmra.mrb[0].mxu0 %v1212
      %v1285 = vpop.f32.mrb[0].mxu0
      %v1286 = vadd.f32 0.0, %v1285
      %v1287 = vpop.f32.mrb[0].mxu0
      %1288 = vdwg.mxu0
      %v1290 = vsel %vm808, %v999, 0
      %v1293 = vsel %vm808, %v1004, 0
      %1295 = vmatprep.subr.mxu0 0.0
      %1296 = vmatpush1.msra.mxu0 %v796
      %1297 = vmatprep.subr.mxu0 0.0
      %1298 = vmatpush1.msra.mxu0 0.0
      %1299 = vmatprep.subr.mxu0 0.0
      %1300 = vmatpush1.msra.mxu0 0.0
      %1301 = vmatprep.subr.mxu0 0.0
      %1302 = vmatpush1.msra.mxu0 0.0
      %1303 = vmatprep.subr.mxu0 0.0
      %1304 = vmatpush1.msra.mxu0 0.0
      %1305 = vmatprep.subr.mxu0 0.0
      %1306 = vmatpush1.msra.mxu0 0.0
      %1307 = vmatprep.subr.mxu0 0.0
      %1308 = vmatpush1.msra.mxu0 0.0
      %1309 = vmatprep.subr.mxu0 0.0
      %1310 = vmatpush1.msra.mxu0 0.0
      %1311 = vmatprep.subr.mxu0 0.0
      %1312 = vmatpush1.msra.mxu0 0.0
      %1313 = vmatprep.subr.mxu0 0.0
      %1314 = vmatpush1.msra.mxu0 0.0
      %1315 = vmatprep.subr.mxu0 0.0
      %1316 = vmatpush1.msra.mxu0 0.0
      %1317 = vmatprep.subr.mxu0 0.0
      %1318 = vmatpush1.msra.mxu0 0.0
      %1319 = vmatprep.subr.mxu0 0.0
      %1320 = vmatpush1.msra.mxu0 0.0
      %1321 = vmatprep.subr.mxu0 0.0
      %1322 = vmatpush1.msra.mxu0 0.0
      %1323 = vmatprep.subr.mxu0 0.0
      %1324 = vmatpush1.msra.mxu0 0.0
      %1325 = vmatprep.subr.mxu0 0.0
      %1326 = vmatpush1.msra.mxu0 0.0
      %1327 = vmatprep.subr.mxu0 0.0
      %1328 = vmatpush1.msra.mxu0 0.0
      %1329 = vmatprep.subr.mxu0 0.0
      %1330 = vmatpush1.msra.mxu0 0.0
      %1331 = vmatprep.subr.mxu0 0.0
      %1332 = vmatpush1.msra.mxu0 0.0
      %1333 = vmatprep.subr.mxu0 0.0
      %1334 = vmatpush1.msra.mxu0 0.0
      %1335 = vmatprep.subr.mxu0 0.0
      %1336 = vmatpush1.msra.mxu0 0.0
      %1337 = vmatprep.subr.mxu0 0.0
      %1338 = vmatpush1.msra.mxu0 0.0
      %1339 = vmatprep.subr.mxu0 0.0
      %1340 = vmatpush1.msra.mxu0 0.0
      %1341 = vmatprep.subr.mxu0 0.0
      %1342 = vmatpush1.msra.mxu0 0.0
      %1343 = vmatprep.subr.mxu0 0.0
      %1344 = vmatpush1.msra.mxu0 0.0
      %1345 = vmatprep.subr.mxu0 0.0
      %1346 = vmatpush1.msra.mxu0 0.0
      %1347 = vmatprep.subr.mxu0 0.0
      %1348 = vmatpush1.msra.mxu0 0.0
      %1349 = vmatprep.subr.mxu0 0.0
      %1350 = vmatpush1.msra.mxu0 0.0
      %1351 = vmatprep.subr.mxu0 0.0
      %1352 = vmatpush1.msra.mxu0 0.0
      %1353 = vmatprep.subr.mxu0 0.0
      %1354 = vmatpush1.msra.mxu0 0.0
      %1355 = vmatprep.subr.mxu0 0.0
      %1356 = vmatpush1.msra.mxu0 0.0
      %1357 = vmatprep.subr.mxu0 0.0
      %1358 = vmatpush1.msra.mxu0 0.0
      %1359 = vmatprep.mubr.f32.mxu0 0.0
      %1360 = vmatmul.mubr.f32.gmra.mrb[0].mxu0 %v1290
      %v1361 = vpop.f32.mrb[0].mxu0
      %v1362 = vadd.f32 %v1281, %v1361
      %v1363 = vpop.f32.mrb[0].mxu0
      %1364 = vmatprep.mubr.f32.mxu0 0.0
      %1365 = vmatmul.mubr.f32.gmra.mrb[0].mxu0 %v1293
      %v1366 = vpop.f32.mrb[0].mxu0
      %v1367 = vadd.f32 %v1286, %v1366
      %v1368 = vpop.f32.mrb[0].mxu0
      %1369 = vdwg.mxu0
      %1370 = vrot.lane.b32.xlu0 %v800, 112
      %v1371 = vpop.permute.xlu0 %1370
      %1372 = vrot.lane.b32.xlu0 %v801, 112
      %v1373 = vpop.permute.xlu0 %1372
      %1374 = vrot.lane.b32.xlu0 %v788, 80
      %v1375 = vpop.permute.xlu0 %1374
      %1376 = vrot.lane.b32.xlu0 %v793, 80
      %v1377 = vpop.permute.xlu0 %1376
      %v1378 = vsel %vm808, %v1371, 0
      %v1380 = vsel %vm808, %v1373, 0
      %v1382 = vsel %vm808, %v1375, 0
      %v1384 = vsel %vm808, %v1377, 0
      %1386 = vmatprep.subr.mxu0 0.0
      %1387 = vmatpush1.xpose.msra.mxu0 %v1382
      %1388 = vmatprep.subr.mxu0 0.0
      %1389 = vmatpush1.xpose.msra.mxu0 %v1384
      %1390 = vmatprep.subr.mxu0 0.0
      %1391 = vmatpush1.xpose.msra.mxu0 0.0
      %1392 = vmatprep.subr.mxu0 0.0
      %1393 = vmatpush1.xpose.msra.mxu0 0.0
      %1394 = vmatprep.subr.mxu0 0.0
      %1395 = vmatpush1.xpose.msra.mxu0 0.0
      %1396 = vmatprep.subr.mxu0 0.0
      %1397 = vmatpush1.xpose.msra.mxu0 0.0
      %1398 = vmatprep.subr.mxu0 0.0
      %1399 = vmatpush1.xpose.msra.mxu0 0.0
      %1400 = vmatprep.subr.mxu0 0.0
      %1401 = vmatpush1.xpose.msra.mxu0 0.0
      %1402 = vmatprep.subr.mxu0 0.0
      %1403 = vmatpush1.xpose.msra.mxu0 0.0
      %1404 = vmatprep.subr.mxu0 0.0
      %1405 = vmatpush1.xpose.msra.mxu0 0.0
      %1406 = vmatprep.subr.mxu0 0.0
      %1407 = vmatpush1.xpose.msra.mxu0 0.0
      %1408 = vmatprep.subr.mxu0 0.0
      %1409 = vmatpush1.xpose.msra.mxu0 0.0
      %1410 = vmatprep.subr.mxu0 0.0
      %1411 = vmatpush1.xpose.msra.mxu0 0.0
      %1412 = vmatprep.subr.mxu0 0.0
      %1413 = vmatpush1.xpose.msra.mxu0 0.0
      %1414 = vmatprep.subr.mxu0 0.0
      %1415 = vmatpush1.xpose.msra.mxu0 0.0
      %1416 = vmatprep.subr.mxu0 0.0
      %1417 = vmatpush1.xpose.msra.mxu0 0.0
      %1418 = vmatprep.subr.mxu0 0.0
      %1419 = vmatpush1.xpose.msra.mxu0 0.0
      %1420 = vmatprep.subr.mxu0 0.0
      %1421 = vmatpush1.xpose.msra.mxu0 0.0
      %1422 = vmatprep.subr.mxu0 0.0
      %1423 = vmatpush1.xpose.msra.mxu0 0.0
      %1424 = vmatprep.subr.mxu0 0.0
      %1425 = vmatpush1.xpose.msra.mxu0 0.0
      %1426 = vmatprep.subr.mxu0 0.0
      %1427 = vmatpush1.xpose.msra.mxu0 0.0
      %1428 = vmatprep.subr.mxu0 0.0
      %1429 = vmatpush1.xpose.msra.mxu0 0.0
      %1430 = vmatprep.subr.mxu0 0.0
      %1431 = vmatpush1.xpose.msra.mxu0 0.0
      %1432 = vmatprep.subr.mxu0 0.0
      %1433 = vmatpush1.xpose.msra.mxu0 0.0
      %1434 = vmatprep.subr.mxu0 0.0
      %1435 = vmatpush1.xpose.msra.mxu0 0.0
      %1436 = vmatprep.subr.mxu0 0.0
      %1437 = vmatpush1.xpose.msra.mxu0 0.0
      %1438 = vmatprep.subr.mxu0 0.0
      %1439 = vmatpush1.xpose.msra.mxu0 0.0
      %1440 = vmatprep.subr.mxu0 0.0
      %1441 = vmatpush1.xpose.msra.mxu0 0.0
      %1442 = vmatprep.subr.mxu0 0.0
      %1443 = vmatpush1.xpose.msra.mxu0 0.0
      %1444 = vmatprep.subr.mxu0 0.0
      %1445 = vmatpush1.xpose.msra.mxu0 0.0
      %1446 = vmatprep.subr.mxu0 0.0
      %1447 = vmatpush1.xpose.msra.mxu0 0.0
      %1448 = vmatprep.subr.mxu0 0.0
      %1449 = vmatpush1.xpose.msra.mxu0 0.0
      %1450 = vmatprep.mubr.f32.mxu0 0.0
      %1451 = vmatmul.mubr.f32.gmra.mrb[0].mxu0 %v1378
      %v1452 = vpop.f32.mrb[0].mxu0
      %v1453 = vadd.f32 0.0, %v1452
      %v1454 = vpop.f32.mrb[0].mxu0
      %1455 = vmatprep.mubr.f32.mxu0 0.0
      %1456 = vmatmul.mubr.f32.gmra.mrb[0].mxu0 %v1380
      %v1457 = vpop.f32.mrb[0].mxu0
      %v1458 = vadd.f32 0.0, %v1457
      %v1459 = vpop.f32.mrb[0].mxu0
      %1460 = vdwg.mxu0
      %v1461 = vsel %vm894, %v1453, -inf
      %1462 = vmax.xlane.f32.xlu0 %v1461
      %v1463 = vpop.xlane.xlu0 %1462
      %v1464 = vsel %vm898, %v1458, -inf
      %1465 = vmax.xlane.f32.xlu0 %v1464
      %v1466 = vpop.xlane.xlu0 %1465
      %v1467 = vsub.f32 %v1453, %v1463
      %v1468 = vsub.f32 %v1458, %v1466
      %v1469 = vmul.f32 %v1467, 1.442695
      %v1470 = vpow.pop %v1469
      %v1471 = vmul.f32 %v1468, 1.442695
      %v1472 = vpow.pop %v1471
      %v1473 = vsel %vm894, %v1470, 0.0
      %1474 = vadd.xlane.f32.xlu0 %v1473
      %v1475 = vpop.xlane.xlu0 %1474
      %v1476 = vsel %vm898, %v1472, 0.0
      %1477 = vadd.xlane.f32.xlu0 %v1476
      %v1478 = vpop.xlane.xlu0 %1477
      %v1479 = vrcp.pop %v1475
      %v1480 = vmul.f32 %v1470, %v1479
      %v1481 = vrcp.pop %v1478
      %v1482 = vmul.f32 %v1472, %v1481
      %1483 = vrot.lane.b32.xlu0 %v788, 48
      %v1484 = vpop.permute.xlu0 %1483
      %1485 = vrot.lane.b32.xlu0 %v793, 48
      %v1486 = vpop.permute.xlu0 %1485
      %v1489 = vsel %vm894, %v1480, 0
      %v1492 = vsel %vm894, %v1482, 0
      %v1494 = vsel %vm929, %v1486, 0
      %1496 = vmatprep.subr.mxu0 0.0
      %1497 = vmatpush1.msra.mxu0 %v1484
      %1498 = vmatprep.subr.mxu0 0.0
      %1499 = vmatpush1.msra.mxu0 %v1494
      %1500 = vmatprep.subr.mxu0 0.0
      %1501 = vmatpush1.msra.mxu0 0.0
      %1502 = vmatprep.subr.mxu0 0.0
      %1503 = vmatpush1.msra.mxu0 0.0
      %1504 = vmatprep.subr.mxu0 0.0
      %1505 = vmatpush1.msra.mxu0 0.0
      %1506 = vmatprep.subr.mxu0 0.0
      %1507 = vmatpush1.msra.mxu0 0.0
      %1508 = vmatprep.subr.mxu0 0.0
      %1509 = vmatpush1.msra.mxu0 0.0
      %1510 = vmatprep.subr.mxu0 0.0
      %1511 = vmatpush1.msra.mxu0 0.0
      %1512 = vmatprep.subr.mxu0 0.0
      %1513 = vmatpush1.msra.mxu0 0.0
      %1514 = vmatprep.subr.mxu0 0.0
      %1515 = vmatpush1.msra.mxu0 0.0
      %1516 = vmatprep.subr.mxu0 0.0
      %1517 = vmatpush1.msra.mxu0 0.0
      %1518 = vmatprep.subr.mxu0 0.0
      %1519 = vmatpush1.msra.mxu0 0.0
      %1520 = vmatprep.subr.mxu0 0.0
      %1521 = vmatpush1.msra.mxu0 0.0
      %1522 = vmatprep.subr.mxu0 0.0
      %1523 = vmatpush1.msra.mxu0 0.0
      %1524 = vmatprep.subr.mxu0 0.0
      %1525 = vmatpush1.msra.mxu0 0.0
      %1526 = vmatprep.subr.mxu0 0.0
      %1527 = vmatpush1.msra.mxu0 0.0
      %1528 = vmatprep.subr.mxu0 0.0
      %1529 = vmatpush1.msra.mxu0 0.0
      %1530 = vmatprep.subr.mxu0 0.0
      %1531 = vmatpush1.msra.mxu0 0.0
      %1532 = vmatprep.subr.mxu0 0.0
      %1533 = vmatpush1.msra.mxu0 0.0
      %1534 = vmatprep.subr.mxu0 0.0
      %1535 = vmatpush1.msra.mxu0 0.0
      %1536 = vmatprep.subr.mxu0 0.0
      %1537 = vmatpush1.msra.mxu0 0.0
      %1538 = vmatprep.subr.mxu0 0.0
      %1539 = vmatpush1.msra.mxu0 0.0
      %1540 = vmatprep.subr.mxu0 0.0
      %1541 = vmatpush1.msra.mxu0 0.0
      %1542 = vmatprep.subr.mxu0 0.0
      %1543 = vmatpush1.msra.mxu0 0.0
      %1544 = vmatprep.subr.mxu0 0.0
      %1545 = vmatpush1.msra.mxu0 0.0
      %1546 = vmatprep.subr.mxu0 0.0
      %1547 = vmatpush1.msra.mxu0 0.0
      %1548 = vmatprep.subr.mxu0 0.0
      %1549 = vmatpush1.msra.mxu0 0.0
      %1550 = vmatprep.subr.mxu0 0.0
      %1551 = vmatpush1.msra.mxu0 0.0
      %1552 = vmatprep.subr.mxu0 0.0
      %1553 = vmatpush1.msra.mxu0 0.0
      %1554 = vmatprep.subr.mxu0 0.0
      %1555 = vmatpush1.msra.mxu0 0.0
      %1556 = vmatprep.subr.mxu0 0.0
      %1557 = vmatpush1.msra.mxu0 0.0
      %1558 = vmatprep.subr.mxu0 0.0
      %1559 = vmatpush1.msra.mxu0 0.0
      %1560 = vmatprep.mubr.f32.mxu0 0.0
      %1561 = vmatmul.mubr.f32.gmra.mrb[0].mxu0 %v1489
      %v1562 = vpop.f32.mrb[0].mxu0
      %v1563 = vadd.f32 0.0, %v1562
      %v1564 = vpop.f32.mrb[0].mxu0
      %1565 = vmatprep.mubr.f32.mxu0 0.0
      %1566 = vmatmul.mubr.f32.gmra.mrb[0].mxu0 %v1492
      %v1567 = vpop.f32.mrb[0].mxu0
      %v1568 = vadd.f32 0.0, %v1567
      %v1569 = vpop.f32.mrb[0].mxu0
      %1570 = vdwg.mxu0
      %v1572 = vsel %vm808, %v1563, 0
      %v1575 = vsel %vm808, %v1568, 0
      %1577 = vmatprep.subr.mxu0 0.0
      %1578 = vmatpush1.msra.mxu0 %v798
      %1579 = vmatprep.subr.mxu0 0.0
      %1580 = vmatpush1.msra.mxu0 0.0
      %1581 = vmatprep.subr.mxu0 0.0
      %1582 = vmatpush1.msra.mxu0 0.0
      %1583 = vmatprep.subr.mxu0 0.0
      %1584 = vmatpush1.msra.mxu0 0.0
      %1585 = vmatprep.subr.mxu0 0.0
      %1586 = vmatpush1.msra.mxu0 0.0
      %1587 = vmatprep.subr.mxu0 0.0
      %1588 = vmatpush1.msra.mxu0 0.0
      %1589 = vmatprep.subr.mxu0 0.0
      %1590 = vmatpush1.msra.mxu0 0.0
      %1591 = vmatprep.subr.mxu0 0.0
      %1592 = vmatpush1.msra.mxu0 0.0
      %1593 = vmatprep.subr.mxu0 0.0
      %1594 = vmatpush1.msra.mxu0 0.0
      %1595 = vmatprep.subr.mxu0 0.0
      %1596 = vmatpush1.msra.mxu0 0.0
      %1597 = vmatprep.subr.mxu0 0.0
      %1598 = vmatpush1.msra.mxu0 0.0
      %1599 = vmatprep.subr.mxu0 0.0
      %1600 = vmatpush1.msra.mxu0 0.0
      %1601 = vmatprep.subr.mxu0 0.0
      %1602 = vmatpush1.msra.mxu0 0.0
      %1603 = vmatprep.subr.mxu0 0.0
      %1604 = vmatpush1.msra.mxu0 0.0
      %1605 = vmatprep.subr.mxu0 0.0
      %1606 = vmatpush1.msra.mxu0 0.0
      %1607 = vmatprep.subr.mxu0 0.0
      %1608 = vmatpush1.msra.mxu0 0.0
      %1609 = vmatprep.subr.mxu0 0.0
      %1610 = vmatpush1.msra.mxu0 0.0
      %1611 = vmatprep.subr.mxu0 0.0
      %1612 = vmatpush1.msra.mxu0 0.0
      %1613 = vmatprep.subr.mxu0 0.0
      %1614 = vmatpush1.msra.mxu0 0.0
      %1615 = vmatprep.subr.mxu0 0.0
      %1616 = vmatpush1.msra.mxu0 0.0
      %1617 = vmatprep.subr.mxu0 0.0
      %1618 = vmatpush1.msra.mxu0 0.0
      %1619 = vmatprep.subr.mxu0 0.0
      %1620 = vmatpush1.msra.mxu0 0.0
      %1621 = vmatprep.subr.mxu0 0.0
      %1622 = vmatpush1.msra.mxu0 0.0
      %1623 = vmatprep.subr.mxu0 0.0
      %1624 = vmatpush1.msra.mxu0 0.0
      %1625 = vmatprep.subr.mxu0 0.0
      %1626 = vmatpush1.msra.mxu0 0.0
      %1627 = vmatprep.subr.mxu0 0.0
      %1628 = vmatpush1.msra.mxu0 0.0
      %1629 = vmatprep.subr.mxu0 0.0
      %1630 = vmatpush1.msra.mxu0 0.0
      %1631 = vmatprep.subr.mxu0 0.0
      %1632 = vmatpush1.msra.mxu0 0.0
      %1633 = vmatprep.subr.mxu0 0.0
      %1634 = vmatpush1.msra.mxu0 0.0
      %1635 = vmatprep.subr.mxu0 0.0
      %1636 = vmatpush1.msra.mxu0 0.0
      %1637 = vmatprep.subr.mxu0 0.0
      %1638 = vmatpush1.msra.mxu0 0.0
      %1639 = vmatprep.subr.mxu0 0.0
      %1640 = vmatpush1.msra.mxu0 0.0
      %1641 = vmatprep.mubr.f32.mxu0 0.0
      %1642 = vmatmul.mubr.f32.gmra.mrb[0].mxu0 %v1572
      %v1643 = vpop.f32.mrb[0].mxu0
      %v1644 = vadd.f32 0.0, %v1643
      %v1645 = vpop.f32.mrb[0].mxu0
      %1646 = vmatprep.mubr.f32.mxu0 0.0
      %1647 = vmatmul.mubr.f32.gmra.mrb[0].mxu0 %v1575
      %v1648 = vpop.f32.mrb[0].mxu0
      %v1649 = vadd.f32 0.0, %v1648
      %v1650 = vpop.f32.mrb[0].mxu0
      %1651 = vdwg.mxu0
      %v1652 = vadd.f32 %v1362, %v1644
      %v1653 = vadd.f32 %v1367, %v1649
      %1654 = vrot.lane.b32.xlu0 %v800, 104
      %v1655 = vpop.permute.xlu0 %1654
      %1656 = vrot.lane.b32.xlu0 %v801, 104
      %v1657 = vpop.permute.xlu0 %1656
      %1658 = vrot.lane.b32.xlu0 %v788, 72
      %v1659 = vpop.permute.xlu0 %1658
      %1660 = vrot.lane.b32.xlu0 %v793, 72
      %v1661 = vpop.permute.xlu0 %1660
      %v1662 = vsel %vm808, %v1655, 0
      %v1664 = vsel %vm808, %v1657, 0
      %v1666 = vsel %vm808, %v1659, 0
      %v1668 = vsel %vm808, %v1661, 0
      %1670 = vmatprep.subr.mxu0 0.0
      %1671 = vmatpush1.xpose.msra.mxu0 %v1666
      %1672 = vmatprep.subr.mxu0 0.0
      %1673 = vmatpush1.xpose.msra.mxu0 %v1668
      %1674 = vmatprep.subr.mxu0 0.0
      %1675 = vmatpush1.xpose.msra.mxu0 0.0
      %1676 = vmatprep.subr.mxu0 0.0
      %1677 = vmatpush1.xpose.msra.mxu0 0.0
      %1678 = vmatprep.subr.mxu0 0.0
      %1679 = vmatpush1.xpose.msra.mxu0 0.0
      %1680 = vmatprep.subr.mxu0 0.0
      %1681 = vmatpush1.xpose.msra.mxu0 0.0
      %1682 = vmatprep.subr.mxu0 0.0
      %1683 = vmatpush1.xpose.msra.mxu0 0.0
      %1684 = vmatprep.subr.mxu0 0.0
      %1685 = vmatpush1.xpose.msra.mxu0 0.0
      %1686 = vmatprep.subr.mxu0 0.0
      %1687 = vmatpush1.xpose.msra.mxu0 0.0
      %1688 = vmatprep.subr.mxu0 0.0
      %1689 = vmatpush1.xpose.msra.mxu0 0.0
      %1690 = vmatprep.subr.mxu0 0.0
      %1691 = vmatpush1.xpose.msra.mxu0 0.0
      %1692 = vmatprep.subr.mxu0 0.0
      %1693 = vmatpush1.xpose.msra.mxu0 0.0
      %1694 = vmatprep.subr.mxu0 0.0
      %1695 = vmatpush1.xpose.msra.mxu0 0.0
      %1696 = vmatprep.subr.mxu0 0.0
      %1697 = vmatpush1.xpose.msra.mxu0 0.0
      %1698 = vmatprep.subr.mxu0 0.0
      %1699 = vmatpush1.xpose.msra.mxu0 0.0
      %1700 = vmatprep.subr.mxu0 0.0
      %1701 = vmatpush1.xpose.msra.mxu0 0.0
      %1702 = vmatprep.subr.mxu0 0.0
      %1703 = vmatpush1.xpose.msra.mxu0 0.0
      %1704 = vmatprep.subr.mxu0 0.0
      %1705 = vmatpush1.xpose.msra.mxu0 0.0
      %1706 = vmatprep.subr.mxu0 0.0
      %1707 = vmatpush1.xpose.msra.mxu0 0.0
      %1708 = vmatprep.subr.mxu0 0.0
      %1709 = vmatpush1.xpose.msra.mxu0 0.0
      %1710 = vmatprep.subr.mxu0 0.0
      %1711 = vmatpush1.xpose.msra.mxu0 0.0
      %1712 = vmatprep.subr.mxu0 0.0
      %1713 = vmatpush1.xpose.msra.mxu0 0.0
      %1714 = vmatprep.subr.mxu0 0.0
      %1715 = vmatpush1.xpose.msra.mxu0 0.0
      %1716 = vmatprep.subr.mxu0 0.0
      %1717 = vmatpush1.xpose.msra.mxu0 0.0
      %1718 = vmatprep.subr.mxu0 0.0
      %1719 = vmatpush1.xpose.msra.mxu0 0.0
      %1720 = vmatprep.subr.mxu0 0.0
      %1721 = vmatpush1.xpose.msra.mxu0 0.0
      %1722 = vmatprep.subr.mxu0 0.0
      %1723 = vmatpush1.xpose.msra.mxu0 0.0
      %1724 = vmatprep.subr.mxu0 0.0
      %1725 = vmatpush1.xpose.msra.mxu0 0.0
      %1726 = vmatprep.subr.mxu0 0.0
      %1727 = vmatpush1.xpose.msra.mxu0 0.0
      %1728 = vmatprep.subr.mxu0 0.0
      %1729 = vmatpush1.xpose.msra.mxu0 0.0
      %1730 = vmatprep.subr.mxu0 0.0
      %1731 = vmatpush1.xpose.msra.mxu0 0.0
      %1732 = vmatprep.subr.mxu0 0.0
      %1733 = vmatpush1.xpose.msra.mxu0 0.0
      %1734 = vmatprep.mubr.f32.mxu0 0.0
      %1735 = vmatmul.mubr.f32.gmra.mrb[0].mxu0 %v1662
      %v1736 = vpop.f32.mrb[0].mxu0
      %v1737 = vadd.f32 0.0, %v1736
      %v1738 = vpop.f32.mrb[0].mxu0
      %1739 = vmatprep.mubr.f32.mxu0 0.0
      %1740 = vmatmul.mubr.f32.gmra.mrb[0].mxu0 %v1664
      %v1741 = vpop.f32.mrb[0].mxu0
      %v1742 = vadd.f32 0.0, %v1741
      %v1743 = vpop.f32.mrb[0].mxu0
      %1744 = vdwg.mxu0
      %v1745 = vsel %vm894, %v1737, -inf
      %1746 = vmax.xlane.f32.xlu0 %v1745
      %v1747 = vpop.xlane.xlu0 %1746
      %v1748 = vsel %vm898, %v1742, -inf
      %1749 = vmax.xlane.f32.xlu0 %v1748
      %v1750 = vpop.xlane.xlu0 %1749
      %v1751 = vsub.f32 %v1737, %v1747
      %v1752 = vsub.f32 %v1742, %v1750
      %v1753 = vmul.f32 %v1751, 1.442695
      %v1754 = vpow.pop %v1753
      %v1755 = vmul.f32 %v1752, 1.442695
      %v1756 = vpow.pop %v1755
      %v1757 = vsel %vm894, %v1754, 0.0
      %1758 = vadd.xlane.f32.xlu0 %v1757
      %v1759 = vpop.xlane.xlu0 %1758
      %v1760 = vsel %vm898, %v1756, 0.0
      %1761 = vadd.xlane.f32.xlu0 %v1760
      %v1762 = vpop.xlane.xlu0 %1761
      %v1763 = vrcp.pop %v1759
      %v1764 = vmul.f32 %v1754, %v1763
      %v1765 = vrcp.pop %v1762
      %v1766 = vmul.f32 %v1756, %v1765
      %1767 = vrot.lane.b32.xlu0 %v788, 40
      %v1768 = vpop.permute.xlu0 %1767
      %1769 = vrot.lane.b32.xlu0 %v793, 40
      %v1770 = vpop.permute.xlu0 %1769
      %v1773 = vsel %vm894, %v1764, 0
      %v1776 = vsel %vm894, %v1766, 0
      %v1778 = vsel %vm929, %v1770, 0
      %1780 = vmatprep.subr.mxu0 0.0
      %1781 = vmatpush1.msra.mxu0 %v1768
      %1782 = vmatprep.subr.mxu0 0.0
      %1783 = vmatpush1.msra.mxu0 %v1778
      %1784 = vmatprep.subr.mxu0 0.0
      %1785 = vmatpush1.msra.mxu0 0.0
      %1786 = vmatprep.subr.mxu0 0.0
      %1787 = vmatpush1.msra.mxu0 0.0
      %1788 = vmatprep.subr.mxu0 0.0
      %1789 = vmatpush1.msra.mxu0 0.0
      %1790 = vmatprep.subr.mxu0 0.0
      %1791 = vmatpush1.msra.mxu0 0.0
      %1792 = vmatprep.subr.mxu0 0.0
      %1793 = vmatpush1.msra.mxu0 0.0
      %1794 = vmatprep.subr.mxu0 0.0
      %1795 = vmatpush1.msra.mxu0 0.0
      %1796 = vmatprep.subr.mxu0 0.0
      %1797 = vmatpush1.msra.mxu0 0.0
      %1798 = vmatprep.subr.mxu0 0.0
      %1799 = vmatpush1.msra.mxu0 0.0
      %1800 = vmatprep.subr.mxu0 0.0
      %1801 = vmatpush1.msra.mxu0 0.0
      %1802 = vmatprep.subr.mxu0 0.0
      %1803 = vmatpush1.msra.mxu0 0.0
      %1804 = vmatprep.subr.mxu0 0.0
      %1805 = vmatpush1.msra.mxu0 0.0
      %1806 = vmatprep.subr.mxu0 0.0
      %1807 = vmatpush1.msra.mxu0 0.0
      %1808 = vmatprep.subr.mxu0 0.0
      %1809 = vmatpush1.msra.mxu0 0.0
      %1810 = vmatprep.subr.mxu0 0.0
      %1811 = vmatpush1.msra.mxu0 0.0
      %1812 = vmatprep.subr.mxu0 0.0
      %1813 = vmatpush1.msra.mxu0 0.0
      %1814 = vmatprep.subr.mxu0 0.0
      %1815 = vmatpush1.msra.mxu0 0.0
      %1816 = vmatprep.subr.mxu0 0.0
      %1817 = vmatpush1.msra.mxu0 0.0
      %1818 = vmatprep.subr.mxu0 0.0
      %1819 = vmatpush1.msra.mxu0 0.0
      %1820 = vmatprep.subr.mxu0 0.0
      %1821 = vmatpush1.msra.mxu0 0.0
      %1822 = vmatprep.subr.mxu0 0.0
      %1823 = vmatpush1.msra.mxu0 0.0
      %1824 = vmatprep.subr.mxu0 0.0
      %1825 = vmatpush1.msra.mxu0 0.0
      %1826 = vmatprep.subr.mxu0 0.0
      %1827 = vmatpush1.msra.mxu0 0.0
      %1828 = vmatprep.subr.mxu0 0.0
      %1829 = vmatpush1.msra.mxu0 0.0
      %1830 = vmatprep.subr.mxu0 0.0
      %1831 = vmatpush1.msra.mxu0 0.0
      %1832 = vmatprep.subr.mxu0 0.0
      %1833 = vmatpush1.msra.mxu0 0.0
      %1834 = vmatprep.subr.mxu0 0.0
      %1835 = vmatpush1.msra.mxu0 0.0
      %1836 = vmatprep.subr.mxu0 0.0
      %1837 = vmatpush1.msra.mxu0 0.0
      %1838 = vmatprep.subr.mxu0 0.0
      %1839 = vmatpush1.msra.mxu0 0.0
      %1840 = vmatprep.subr.mxu0 0.0
      %1841 = vmatpush1.msra.mxu0 0.0
      %1842 = vmatprep.subr.mxu0 0.0
      %1843 = vmatpush1.msra.mxu0 0.0
      %1844 = vmatprep.mubr.f32.mxu0 0.0
      %1845 = vmatmul.mubr.f32.gmra.mrb[0].mxu0 %v1773
      %v1846 = vpop.f32.mrb[0].mxu0
      %v1847 = vadd.f32 0.0, %v1846
      %v1848 = vpop.f32.mrb[0].mxu0
      %1849 = vmatprep.mubr.f32.mxu0 0.0
      %1850 = vmatmul.mubr.f32.gmra.mrb[0].mxu0 %v1776
      %v1851 = vpop.f32.mrb[0].mxu0
      %v1852 = vadd.f32 0.0, %v1851
      %v1853 = vpop.f32.mrb[0].mxu0
      %1854 = vdwg.mxu0
      %v1856 = vsel %vm808, %v1847, 0
      %v1859 = vsel %vm808, %v1852, 0
      %1861 = vmatprep.subr.mxu0 0.0
      %1862 = vmatpush1.msra.mxu0 %v799
      %1863 = vmatprep.subr.mxu0 0.0
      %1864 = vmatpush1.msra.mxu0 0.0
      %1865 = vmatprep.subr.mxu0 0.0
      %1866 = vmatpush1.msra.mxu0 0.0
      %1867 = vmatprep.subr.mxu0 0.0
      %1868 = vmatpush1.msra.mxu0 0.0
      %1869 = vmatprep.subr.mxu0 0.0
      %1870 = vmatpush1.msra.mxu0 0.0
      %1871 = vmatprep.subr.mxu0 0.0
      %1872 = vmatpush1.msra.mxu0 0.0
      %1873 = vmatprep.subr.mxu0 0.0
      %1874 = vmatpush1.msra.mxu0 0.0
      %1875 = vmatprep.subr.mxu0 0.0
      %1876 = vmatpush1.msra.mxu0 0.0
      %1877 = vmatprep.subr.mxu0 0.0
      %1878 = vmatpush1.msra.mxu0 0.0
      %1879 = vmatprep.subr.mxu0 0.0
      %1880 = vmatpush1.msra.mxu0 0.0
      %1881 = vmatprep.subr.mxu0 0.0
      %1882 = vmatpush1.msra.mxu0 0.0
      %1883 = vmatprep.subr.mxu0 0.0
      %1884 = vmatpush1.msra.mxu0 0.0
      %1885 = vmatprep.subr.mxu0 0.0
      %1886 = vmatpush1.msra.mxu0 0.0
      %1887 = vmatprep.subr.mxu0 0.0
      %1888 = vmatpush1.msra.mxu0 0.0
      %1889 = vmatprep.subr.mxu0 0.0
      %1890 = vmatpush1.msra.mxu0 0.0
      %1891 = vmatprep.subr.mxu0 0.0
      %1892 = vmatpush1.msra.mxu0 0.0
      %1893 = vmatprep.subr.mxu0 0.0
      %1894 = vmatpush1.msra.mxu0 0.0
      %1895 = vmatprep.subr.mxu0 0.0
      %1896 = vmatpush1.msra.mxu0 0.0
      %1897 = vmatprep.subr.mxu0 0.0
      %1898 = vmatpush1.msra.mxu0 0.0
      %1899 = vmatprep.subr.mxu0 0.0
      %1900 = vmatpush1.msra.mxu0 0.0
      %1901 = vmatprep.subr.mxu0 0.0
      %1902 = vmatpush1.msra.mxu0 0.0
      %1903 = vmatprep.subr.mxu0 0.0
      %1904 = vmatpush1.msra.mxu0 0.0
      %1905 = vmatprep.subr.mxu0 0.0
      %1906 = vmatpush1.msra.mxu0 0.0
      %1907 = vmatprep.subr.mxu0 0.0
      %1908 = vmatpush1.msra.mxu0 0.0
      %1909 = vmatprep.subr.mxu0 0.0
      %1910 = vmatpush1.msra.mxu0 0.0
      %1911 = vmatprep.subr.mxu0 0.0
      %1912 = vmatpush1.msra.mxu0 0.0
      %1913 = vmatprep.subr.mxu0 0.0
      %1914 = vmatpush1.msra.mxu0 0.0
      %1915 = vmatprep.subr.mxu0 0.0
      %1916 = vmatpush1.msra.mxu0 0.0
      %1917 = vmatprep.subr.mxu0 0.0
      %1918 = vmatpush1.msra.mxu0 0.0
      %1919 = vmatprep.subr.mxu0 0.0
      %1920 = vmatpush1.msra.mxu0 0.0
      %1921 = vmatprep.subr.mxu0 0.0
      %1922 = vmatpush1.msra.mxu0 0.0
      %1923 = vmatprep.subr.mxu0 0.0
      %1924 = vmatpush1.msra.mxu0 0.0
      %1925 = vmatprep.mubr.f32.mxu0 0.0
      %1926 = vmatmul.mubr.f32.gmra.mrb[0].mxu0 %v1856
      %v1927 = vpop.f32.mrb[0].mxu0
      %v1928 = vadd.f32 0.0, %v1927
      %v1929 = vpop.f32.mrb[0].mxu0
      %1930 = vmatprep.mubr.f32.mxu0 0.0
      %1931 = vmatmul.mubr.f32.gmra.mrb[0].mxu0 %v1859
      %v1932 = vpop.f32.mrb[0].mxu0
      %v1933 = vadd.f32 0.0, %v1932
      %v1934 = vpop.f32.mrb[0].mxu0
      %1935 = vdwg.mxu0
      %v1936 = vadd.f32 %v1652, %v1928
      %v1937 = vadd.f32 %v1653, %v1933
      %v1938 = vadd.f32 %v655, %v1936
      %v1939 = vadd.f32 %v656, %v1937
      %v1940 = vld [vmem:[%s617] sm:$0x1]
      %v1942 = vlaneseq
      %v1943 = vshrl.u32 %v1942, 7
      %v1944 = vsub.s32 0, %v1943
      %v1945 = vrot.slane %v1940, %v1944
      %v1947 = vadd.f32 %v1938, %v1945
      %v1948 = vadd.f32 %v1939, %v1945
      %v1949 = vld [vmem:[%s620] sm:$0x1]
      %v1950 = vld [vmem:[%s623] sm:$0x1]
      %v1951 = vsel %vm659, %v1947, 0.0
      %1952 = vadd.xlane.f32.xlu0 %v1951
      %v1953 = vpop.xlane.xlu0 %1952
      %v1954 = vsel %vm663, %v1948, 0.0
      %1955 = vadd.xlane.f32.xlu0 %v1954
      %v1956 = vpop.xlane.xlu0 %1955
      %v1957 = vmul.f32 %v1953, %v667
      %v1958 = vmul.f32 %v1956, %v667
      %v1959 = vsub.f32 %v1947, %v1957
      %v1960 = vsub.f32 %v1948, %v1958
      %v1961 = vmul.f32 %v1959, %v1959
      %v1962 = vmul.f32 %v1960, %v1960
      %v1963 = vsel %vm659, %v1961, 0.0
      %1964 = vadd.xlane.f32.xlu0 %v1963
      %v1965 = vpop.xlane.xlu0 %1964
      %v1966 = vsel %vm663, %v1962, 0.0
      %1967 = vadd.xlane.f32.xlu0 %v1966
      %v1968 = vpop.xlane.xlu0 %1967
      %v1969 = vmul.f32 %v1965, %v667
      %v1970 = vmul.f32 %v1968, %v667
      %v1971 = vadd.f32 %v1969, 1e-05
      %v1972 = vadd.f32 %v1970, 1e-05
      %v1973 = vrsqrt.pop %v1971
      %v1974 = vrsqrt.pop %v1972
      %v1975 = vmul.f32 %v1959, %v1973
      %v1976 = vmul.f32 %v1960, %v1974
      %v1978 = vlaneseq
      %v1979 = vshrl.u32 %v1978, 7
      %v1980 = vsub.s32 0, %v1979
      %v1981 = vrot.slane %v1949, %v1980
      %v1983 = vmul.f32 %v1975, %v1981
      %v1984 = vmul.f32 %v1976, %v1981
      %v1986 = vlaneseq
      %v1987 = vshrl.u32 %v1986, 7
      %v1988 = vsub.s32 0, %v1987
      %v1989 = vrot.slane %v1950, %v1988
      %v1991 = vadd.f32 %v1983, %v1989
      %v1992 = vadd.f32 %v1984, %v1989
      %v1993 = vld [vmem:[%s628] sm:$0xff]
      %v1994 = vld [vmem:[%s628 + $0x8] sm:$0xff]
      %v1995 = vld [vmem:[%s628 + $0x10] sm:$0xff]
      %v1996 = vld [vmem:[%s628 + $0x18] sm:$0xff]
      %v1997 = vld [vmem:[%s631] sm:$0x1]
      %v1999 = vlaneseq
      %v2000 = vshrl.u32 %v1999, 7
      %v2001 = vsub.s32 0, %v2000
      %v2002 = vrot.slane %v1997, %v2001
      %v2005 = vsel %vm659, %v1991, 0
      %v2008 = vsel %vm659, %v1992, 0
      %2010 = vmatprep.subr.mxu0 0.0
      %2011 = vmatpush1.msra.mxu0 %v1993
      %2012 = vmatprep.subr.mxu0 0.0
      %2013 = vmatpush1.msra.mxu0 %v1994
      %2014 = vmatprep.subr.mxu0 0.0
      %2015 = vmatpush1.msra.mxu0 %v1995
      %2016 = vmatprep.subr.mxu0 0.0
      %2017 = vmatpush1.msra.mxu0 %v1996
      %2018 = vmatprep.subr.mxu0 0.0
      %2019 = vmatpush1.msra.mxu0 0.0
      %2020 = vmatprep.subr.mxu0 0.0
      %2021 = vmatpush1.msra.mxu0 0.0
      %2022 = vmatprep.subr.mxu0 0.0
      %2023 = vmatpush1.msra.mxu0 0.0
      %2024 = vmatprep.subr.mxu0 0.0
      %2025 = vmatpush1.msra.mxu0 0.0
      %2026 = vmatprep.subr.mxu0 0.0
      %2027 = vmatpush1.msra.mxu0 0.0
      %2028 = vmatprep.subr.mxu0 0.0
      %2029 = vmatpush1.msra.mxu0 0.0
      %2030 = vmatprep.subr.mxu0 0.0
      %2031 = vmatpush1.msra.mxu0 0.0
      %2032 = vmatprep.subr.mxu0 0.0
      %2033 = vmatpush1.msra.mxu0 0.0
      %2034 = vmatprep.subr.mxu0 0.0
      %2035 = vmatpush1.msra.mxu0 0.0
      %2036 = vmatprep.subr.mxu0 0.0
      %2037 = vmatpush1.msra.mxu0 0.0
      %2038 = vmatprep.subr.mxu0 0.0
      %2039 = vmatpush1.msra.mxu0 0.0
      %2040 = vmatprep.subr.mxu0 0.0
      %2041 = vmatpush1.msra.mxu0 0.0
      %2042 = vmatprep.subr.mxu0 0.0
      %2043 = vmatpush1.msra.mxu0 0.0
      %2044 = vmatprep.subr.mxu0 0.0
      %2045 = vmatpush1.msra.mxu0 0.0
      %2046 = vmatprep.subr.mxu0 0.0
      %2047 = vmatpush1.msra.mxu0 0.0
      %2048 = vmatprep.subr.mxu0 0.0
      %2049 = vmatpush1.msra.mxu0 0.0
      %2050 = vmatprep.subr.mxu0 0.0
      %2051 = vmatpush1.msra.mxu0 0.0
      %2052 = vmatprep.subr.mxu0 0.0
      %2053 = vmatpush1.msra.mxu0 0.0
      %2054 = vmatprep.subr.mxu0 0.0
      %2055 = vmatpush1.msra.mxu0 0.0
      %2056 = vmatprep.subr.mxu0 0.0
      %2057 = vmatpush1.msra.mxu0 0.0
      %2058 = vmatprep.subr.mxu0 0.0
      %2059 = vmatpush1.msra.mxu0 0.0
      %2060 = vmatprep.subr.mxu0 0.0
      %2061 = vmatpush1.msra.mxu0 0.0
      %2062 = vmatprep.subr.mxu0 0.0
      %2063 = vmatpush1.msra.mxu0 0.0
      %2064 = vmatprep.subr.mxu0 0.0
      %2065 = vmatpush1.msra.mxu0 0.0
      %2066 = vmatprep.subr.mxu0 0.0
      %2067 = vmatpush1.msra.mxu0 0.0
      %2068 = vmatprep.subr.mxu0 0.0
      %2069 = vmatpush1.msra.mxu0 0.0
      %2070 = vmatprep.subr.mxu0 0.0
      %2071 = vmatpush1.msra.mxu0 0.0
      %2072 = vmatprep.subr.mxu0 0.0
      %2073 = vmatpush1.msra.mxu0 0.0
      %2074 = vmatprep.mubr.f32.mxu0 0.0
      %2075 = vmatmul.mubr.f32.gmra.mrb[0].mxu0 %v2005
      %v2076 = vpop.f32.mrb[0].mxu0
      %v2077 = vadd.f32 %v2002, %v2076
      %v2078 = vpop.f32.mrb[0].mxu0
      %2079 = vmatprep.mubr.f32.mxu0 0.0
      %2080 = vmatmul.mubr.f32.gmra.mrb[0].mxu0 %v2008
      %v2081 = vpop.f32.mrb[0].mxu0
      %v2082 = vadd.f32 %v2002, %v2081
      %v2083 = vpop.f32.mrb[0].mxu0
      %2084 = vdwg.mxu0
      %v2085 = vmax.f32 %v2077, 0.0
      %v2086 = vmax.f32 %v2082, 0.0
      %v2087 = vld [vmem:[%s636] sm:$0xff]
      %v2088 = vld [vmem:[%s636 + $0x8] sm:$0xff]
      %v2089 = vld [vmem:[%s636 + $0x10] sm:$0xff]
      %v2090 = vld [vmem:[%s636 + $0x18] sm:$0xff]
      %v2091 = vld [vmem:[%s636 + $0x20] sm:$0xff]
      %v2092 = vld [vmem:[%s636 + $0x28] sm:$0xff]
      %v2093 = vld [vmem:[%s636 + $0x30] sm:$0xff]
      %v2094 = vld [vmem:[%s636 + $0x38] sm:$0xff]
      %vm2095 = vcmask 523264
      %v2097 = vsel %vm2095, %v2085, 0
      %v2100 = vsel %vm2095, %v2086, 0
      %2102 = vmatprep.subr.mxu0 0.0
      %2103 = vmatpush1.msra.mxu0 %v2087
      %2104 = vmatprep.subr.mxu0 0.0
      %2105 = vmatpush1.msra.mxu0 %v2088
      %2106 = vmatprep.subr.mxu0 0.0
      %2107 = vmatpush1.msra.mxu0 %v2089
      %2108 = vmatprep.subr.mxu0 0.0
      %2109 = vmatpush1.msra.mxu0 %v2090
      %2110 = vmatprep.subr.mxu0 0.0
      %2111 = vmatpush1.msra.mxu0 %v2091
      %2112 = vmatprep.subr.mxu0 0.0
      %2113 = vmatpush1.msra.mxu0 %v2092
      %2114 = vmatprep.subr.mxu0 0.0
      %2115 = vmatpush1.msra.mxu0 %v2093
      %2116 = vmatprep.subr.mxu0 0.0
      %2117 = vmatpush1.msra.mxu0 %v2094
      %2118 = vmatprep.subr.mxu0 0.0
      %2119 = vmatpush1.msra.mxu0 0.0
      %2120 = vmatprep.subr.mxu0 0.0
      %2121 = vmatpush1.msra.mxu0 0.0
      %2122 = vmatprep.subr.mxu0 0.0
      %2123 = vmatpush1.msra.mxu0 0.0
      %2124 = vmatprep.subr.mxu0 0.0
      %2125 = vmatpush1.msra.mxu0 0.0
      %2126 = vmatprep.subr.mxu0 0.0
      %2127 = vmatpush1.msra.mxu0 0.0
      %2128 = vmatprep.subr.mxu0 0.0
      %2129 = vmatpush1.msra.mxu0 0.0
      %2130 = vmatprep.subr.mxu0 0.0
      %2131 = vmatpush1.msra.mxu0 0.0
      %2132 = vmatprep.subr.mxu0 0.0
      %2133 = vmatpush1.msra.mxu0 0.0
      %2134 = vmatprep.subr.mxu0 0.0
      %2135 = vmatpush1.msra.mxu0 0.0
      %2136 = vmatprep.subr.mxu0 0.0
      %2137 = vmatpush1.msra.mxu0 0.0
      %2138 = vmatprep.subr.mxu0 0.0
      %2139 = vmatpush1.msra.mxu0 0.0
      %2140 = vmatprep.subr.mxu0 0.0
      %2141 = vmatpush1.msra.mxu0 0.0
      %2142 = vmatprep.subr.mxu0 0.0
      %2143 = vmatpush1.msra.mxu0 0.0
      %2144 = vmatprep.subr.mxu0 0.0
      %2145 = vmatpush1.msra.mxu0 0.0
      %2146 = vmatprep.subr.mxu0 0.0
      %2147 = vmatpush1.msra.mxu0 0.0
      %2148 = vmatprep.subr.mxu0 0.0
      %2149 = vmatpush1.msra.mxu0 0.0
      %2150 = vmatprep.subr.mxu0 0.0
      %2151 = vmatpush1.msra.mxu0 0.0
      %2152 = vmatprep.subr.mxu0 0.0
      %2153 = vmatpush1.msra.mxu0 0.0
      %2154 = vmatprep.subr.mxu0 0.0
      %2155 = vmatpush1.msra.mxu0 0.0
      %2156 = vmatprep.subr.mxu0 0.0
      %2157 = vmatpush1.msra.mxu0 0.0
      %2158 = vmatprep.subr.mxu0 0.0
      %2159 = vmatpush1.msra.mxu0 0.0
      %2160 = vmatprep.subr.mxu0 0.0
      %2161 = vmatpush1.msra.mxu0 0.0
      %2162 = vmatprep.subr.mxu0 0.0
      %2163 = vmatpush1.msra.mxu0 0.0
      %2164 = vmatprep.subr.mxu0 0.0
      %2165 = vmatpush1.msra.mxu0 0.0
      %2166 = vmatprep.mubr.f32.mxu0 0.0
      %2167 = vmatmul.mubr.f32.gmra.mrb[0].mxu0 %v2097
      %v2168 = vpop.f32.mrb[0].mxu0
      %v2169 = vadd.f32 0.0, %v2168
      %v2170 = vpop.f32.mrb[0].mxu0
      %2171 = vmatprep.mubr.f32.mxu0 0.0
      %2172 = vmatmul.mubr.f32.gmra.mrb[0].mxu0 %v2100
      %v2173 = vpop.f32.mrb[0].mxu0
      %v2174 = vadd.f32 0.0, %v2173
      %v2175 = vpop.f32.mrb[0].mxu0
      %2176 = vdwg.mxu0
      %v2177 = vadd.f32 %v1947, %v2169
      %v2178 = vadd.f32 %v1948, %v2174
      %v2179 = vld [vmem:[%s639] sm:$0x1]
      %v2181 = vlaneseq
      %v2182 = vshrl.u32 %v2181, 7
      %v2183 = vsub.s32 0, %v2182
      %v2184 = vrot.slane %v2179, %v2183
      %v2186 = vadd.f32 %v2177, %v2184
      %v2187 = vadd.f32 %v2178, %v2184
      %2188 = vst.msk [vmem:[%s644] sm:$0xff] %vm659, %v2186
      %2189 = vst.msk [vmem:[%s644 + $0x8] sm:$0x1] %vm663, %v2187
      %p2190 = scmp.lt.s32.totalorder %s28, 1
      %s2191 = scalar_select %p2190, %s28, 1
      %s2192 = smul.addr %s2191, 2
      %s2193 = smul.addr %s2192, 8
      %s2194 = scalar_lea.vmem %s13, %s2193
      // Predicated region
      $region77: #{tpu_custom_call.1} parent=71 // pred_check
        %p2195 = pneg %p392
      $region78: #{tpu_custom_call.1} parent=71 // pred_check_branch
        %2197 = sbr.rel (%p2195) target = $region80
      $region79: #{tpu_custom_call.1} parent=71 // pred_region
        _
      $region80: #{tpu_custom_call.1} parent=71 // pred_fallthru
        _
    $region72: #{tpu_custom_call.1} parent=5 // pred_fallthru
      _
    %p2198 = scmp.le.s32.totalorder 2, %s19
    // Predicated region
    $region81: #{tpu_custom_call.1} parent=5 // pred_check
      %p2199 = pneg %p2198
    $region82: #{tpu_custom_call.1} parent=5 // pred_check_branch
      %2201 = sbr.rel (%p2199) target = $region84
    $region83: #{tpu_custom_call.1} parent=5 // pred_region
      %s2202 = ssub.s32 %s19, 2
      // Predicated region
      $region85: #{tpu_custom_call.1} parent=83 // pred_check
        %p2203 = pneg %p398
      $region86: #{tpu_custom_call.1} parent=83 // pred_check_branch
        %2205 = sbr.rel (%p2203) target = $region88
      $region87: #{tpu_custom_call.1} parent=83 // pred_region
        %p2206 = scmp.lt.s32.totalorder %s30, 1
        %s2207 = scalar_select %p2206, %s30, 1
        %s2208 = smul.addr %s2207, 2
        %s2209 = smul.addr %s2208, 8
        %s2210 = scalar_lea.vmem %s13, %s2209
      $region88: #{tpu_custom_call.1} parent=83 // pred_fallthru
        _
    $region84: #{tpu_custom_call.1} parent=5 // pred_fallthru
      _
  $region6: #{tpu_custom_call.1} parent=0 // loop_footer
    %s23 = sadd.s32 1, %s19
  $region7: #{tpu_custom_call.1} parent=0 // loop_footer_branch
    %18 = sbr.rel target = $region3
  $region8: #{tpu_custom_call.1} parent=0 // loop_exit
    _

</llo_original>
